<compile_context>
chip_gen: v7x
topology: tpu7x:2x2x1
jax: 0.10.0
libtpu: 0.0.40
codegen_flags: <defaults>
</compile_context>

<pallas_src>
from functools import partial

import jax
import jax.numpy as jnp
from jax.experimental import pallas as pl
from jax.experimental.pallas import tpu as pltpu


def _gru_kernel(gi_r_ref, gi_z_ref, gi_n_ref,      # (T*B, H) precomputed input projections
                whh_r_ref, whh_z_ref, whh_n_ref,   # (H, H) hidden weights per gate (r, z, n)
                bhh_n_ref,                         # (1, H) hidden bias of the n gate
                wfc_ref, bfc_ref,                  # (H, O), (1, O) fused Linear
                out_ref,                           # (T*B, O)
                hs_ref,                            # VMEM scratch (T*B, H): hidden-state slab
                *, batch_size):
    B = batch_size
    TB, H = hs_ref.shape
    T = TB // B

    # Loop-invariant weight loads hoisted out of the recurrence (stay vreg-resident).
    whh_r = whh_r_ref[...]
    whh_z = whh_z_ref[...]
    whh_n = whh_n_ref[...]
    bhh_n = bhh_n_ref[...]

    def step(t, h_prev):
        row = t * B
        # Hidden projections: three small (B, H) @ (H, H) MXU calls, one per gate.
        gh_r = jnp.dot(h_prev, whh_r, preferred_element_type=jnp.float32)
        gh_z = jnp.dot(h_prev, whh_z, preferred_element_type=jnp.float32)
        gh_n = jnp.dot(h_prev, whh_n, preferred_element_type=jnp.float32) + bhh_n
        # Gate math (PyTorch GRU, gate order r, z, n); gi_* already include b_ih (+ b_hh
        # for the r/z gates), so only the n-gate hidden bias is applied per step.
        r = jax.nn.sigmoid(gi_r_ref[pl.ds(row, B), :] + gh_r)
        z = jax.nn.sigmoid(gi_z_ref[pl.ds(row, B), :] + gh_z)
        n = jnp.tanh(gi_n_ref[pl.ds(row, B), :] + r * gh_n)
        h_new = (1.0 - z) * n + z * h_prev
        hs_ref[pl.ds(row, B), :] = h_new
        return h_new

    h0 = jnp.zeros((B, H), jnp.float32)            # matches torch.zeros(num_layers, B, H)
    jax.lax.fori_loop(0, T, step, h0, unroll=True)  # serial recurrence, fully unrolled

    # Hoisted fused Linear: one (T*B, H) @ (H, O) matmul + a single output store.
    out_ref[...] = (jnp.dot(hs_ref[...], wfc_ref[...],
                            preferred_element_type=jnp.float32)
                    + bfc_ref[...]).astype(out_ref.dtype)


def gru_model_forward(tokens, params):
    """tokens: int32 [B, T]. Returns [B, T, O] float32."""
    emb_table = params["embedding"]        # (V, H)
    w_ih_t = params["w_ih_t"]              # (H, 3H)  gate order r, z, n
    w_hh_t = params["w_hh_t"]              # (H, 3H)
    b_ih = params["b_ih"]                  # (1, 3H)
    b_hh = params["b_hh"]                  # (1, 3H)
    w_fc_t = params["w_fc_t"]              # (H, O)
    b_fc = params["b_fc"]                  # (1, O)

    B, T = tokens.shape
    H = emb_table.shape[1]
    O = w_fc_t.shape[1]

    # TODO(synk): the nn.Embedding gather (data-dependent row lookup) stays in XLA glue.
    # Gather directly in time-major order: transposing the tiny int token matrix fuses into
    # the gather, so no (B,T,H) float transpose ever round-trips HBM.
    x_tbh = jnp.take(emb_table, tokens.T, axis=0)          # (T, B, H)
    x2d = x_tbh.reshape(T * B, H)                          # (T*B, H) — rows fill sublanes

    # Hoisted input projection for all T steps at once, with biases folded:
    #   r/z gates: + b_ih + b_hh ; n gate: + b_ih only (b_hn must multiply with r in-loop).
    gi = x2d @ w_ih_t                                      # (T*B, 3H), one batched matmul
    gi_r = gi[:, 0:H] + b_ih[:, 0:H] + b_hh[:, 0:H]
    gi_z = gi[:, H:2 * H] + b_ih[:, H:2 * H] + b_hh[:, H:2 * H]
    gi_n = gi[:, 2 * H:3 * H] + b_ih[:, 2 * H:3 * H]

    # Pre-split hidden weights per gate so the kernel never slices the 3H lane axis.
    whh_r = w_hh_t[:, 0:H]
    whh_z = w_hh_t[:, H:2 * H]
    whh_n = w_hh_t[:, 2 * H:3 * H]
    bhh_n = b_hh[:, 2 * H:3 * H]

    vmem_spec = pl.BlockSpec(memory_space=pltpu.MemorySpace.VMEM)
    out_2d = pl.pallas_call(
        partial(_gru_kernel, batch_size=B),
        out_shape=jax.ShapeDtypeStruct((T * B, O), jnp.float32),
        in_specs=[vmem_spec] * 9,
        out_specs=vmem_spec,
        scratch_shapes=[pltpu.VMEM((T * B, H), jnp.float32)],   # hidden-state slab
    )(gi_r, gi_z, gi_n, whh_r, whh_z, whh_n, bhh_n, w_fc_t, b_fc)

    # Tiny layout plumbing back to batch-first (T*B*O*4 = 640 bytes at these shapes).
    return out_2d.reshape(T, B, O).transpose(1, 0, 2)           # (B, T, O)


def _reference_forward(tokens, params):
    """Pure-JAX reference (lax.scan) mirroring torch.nn.GRU semantics."""
    emb = jnp.take(params["embedding"], tokens, axis=0)          # (B, T, H)
    H = emb.shape[-1]
    w_ih_t, w_hh_t = params["w_ih_t"], params["w_hh_t"]
    b_ih, b_hh = params["b_ih"], params["b_hh"]

    def step(h, x_t):
        gi = x_t @ w_ih_t + b_ih
        gh = h @ w_hh_t + b_hh
        r = jax.nn.sigmoid(gi[:, :H] + gh[:, :H])
        z = jax.nn.sigmoid(gi[:, H:2 * H] + gh[:, H:2 * H])
        n = jnp.tanh(gi[:, 2 * H:] + r * gh[:, 2 * H:])
        h_new = (1.0 - z) * n + z * h
        return h_new, h_new

    h0 = jnp.zeros((tokens.shape[0], H), jnp.float32)
    _, hs = jax.lax.scan(step, h0, jnp.transpose(emb, (1, 0, 2)))  # (T, B, H)
    out = hs @ params["w_fc_t"] + params["b_fc"]                   # (T, B, O)
    return jnp.transpose(out, (1, 0, 2))


def init_params(key, input_dim, hidden_dim, output_dim):
    ks = jax.random.split(key, 7)
    s = 1.0 / jnp.sqrt(hidden_dim)
    return {
        "embedding": jax.random.normal(ks[0], (input_dim, hidden_dim), jnp.float32),
        "w_ih_t": jax.random.uniform(ks[1], (hidden_dim, 3 * hidden_dim), jnp.float32, -s, s),
        "w_hh_t": jax.random.uniform(ks[2], (hidden_dim, 3 * hidden_dim), jnp.float32, -s, s),
        "b_ih": jax.random.uniform(ks[3], (1, 3 * hidden_dim), jnp.float32, -s, s),
        "b_hh": jax.random.uniform(ks[4], (1, 3 * hidden_dim), jnp.float32, -s, s),
        "w_fc_t": jax.random.uniform(ks[5], (hidden_dim, output_dim), jnp.float32, -s, s),
        "b_fc": jax.random.uniform(ks[6], (1, output_dim), jnp.float32, -s, s),
    }


if __name__ == "__main__":
    INPUT_DIM = 16    # vocab size
    HIDDEN_DIM = 32
    OUTPUT_DIM = 10
    B, T = 2, 8

    key = jax.random.PRNGKey(0)
    k_par, k_tok = jax.random.split(key)
    params = init_params(k_par, INPUT_DIM, HIDDEN_DIM, OUTPUT_DIM)
    tokens = jax.random.randint(k_tok, (B, T), 0, INPUT_DIM, dtype=jnp.int32)

    fwd = jax.jit(gru_model_forward)
    out = jax.block_until_ready(fwd(tokens, params))
    ref = jax.block_until_ready(_reference_forward(tokens, params))

    assert out.shape == (B, T, OUTPUT_DIM)
    assert jnp.allclose(out, ref, atol=1e-5, rtol=1e-5)
    print("KERNEL_OK")
</pallas_src>

<mosaic_0001>
module attributes {stable_mosaic.version = 11 : i64} {
  func.func @_gru_kernel(%arg0: memref<16x32xf32, #tpu.memory_space<vmem>>, %arg1: memref<16x32xf32, #tpu.memory_space<vmem>>, %arg2: memref<16x32xf32, #tpu.memory_space<vmem>>, %arg3: memref<32x32xf32, #tpu.memory_space<vmem>>, %arg4: memref<32x32xf32, #tpu.memory_space<vmem>>, %arg5: memref<32x32xf32, #tpu.memory_space<vmem>>, %arg6: memref<1x32xf32, #tpu.memory_space<vmem>>, %arg7: memref<32x10xf32, #tpu.memory_space<vmem>>, %arg8: memref<1x10xf32, #tpu.memory_space<vmem>>, %arg9: memref<16x10xf32, #tpu.memory_space<vmem>>, %arg10: memref<16x32xf32, #tpu.memory_space<vmem>>) attributes {dimension_semantics = [], scalar_prefetch = 0 : i64, scratch_operands = 1 : i64, tpu.core_type = #tpu.core_type<tc>} {
    %c0 = arith.constant 0 : index
    %c0_0 = arith.constant 0 : index
    %0 = vector.load %arg3[%c0, %c0_0] : memref<32x32xf32, #tpu.memory_space<vmem>>, vector<32x32xf32>
    %c0_1 = arith.constant 0 : index
    %c0_2 = arith.constant 0 : index
    %1 = vector.load %arg4[%c0_1, %c0_2] : memref<32x32xf32, #tpu.memory_space<vmem>>, vector<32x32xf32>
    %c0_3 = arith.constant 0 : index
    %c0_4 = arith.constant 0 : index
    %2 = vector.load %arg5[%c0_3, %c0_4] : memref<32x32xf32, #tpu.memory_space<vmem>>, vector<32x32xf32>
    %c0_5 = arith.constant 0 : index
    %c0_6 = arith.constant 0 : index
    %3 = vector.load %arg6[%c0_5, %c0_6] : memref<1x32xf32, #tpu.memory_space<vmem>>, vector<1x32xf32>
    %cst = arith.constant 0.000000e+00 : f32
    %4 = vector.broadcast %cst : f32 to vector<2x32xf32>
    %c0_i32 = arith.constant 0 : i32
    %c2_i32 = arith.constant 2 : i32
    %5 = arith.muli %c0_i32, %c2_i32 : i32
    %cst_7 = arith.constant dense<0.000000e+00> : vector<2x32xf32>
    %6 = tpu.matmul %4, %0, %cst_7 {dimension_numbers = #tpu.dot_dimension_numbers<[1], [0], [0], [1], [0, 0, 1, 1], [], []>} : vector<2x32xf32>, vector<32x32xf32>, vector<2x32xf32> -> vector<2x32xf32>
    %cst_8 = arith.constant dense<0.000000e+00> : vector<2x32xf32>
    %7 = tpu.matmul %4, %1, %cst_8 {dimension_numbers = #tpu.dot_dimension_numbers<[1], [0], [0], [1], [0, 0, 1, 1], [], []>} : vector<2x32xf32>, vector<32x32xf32>, vector<2x32xf32> -> vector<2x32xf32>
    %cst_9 = arith.constant dense<0.000000e+00> : vector<2x32xf32>
    %8 = tpu.matmul %4, %2, %cst_9 {dimension_numbers = #tpu.dot_dimension_numbers<[1], [0], [0], [1], [0, 0, 1, 1], [], []>} : vector<2x32xf32>, vector<32x32xf32>, vector<2x32xf32> -> vector<2x32xf32>
    %9 = vector.broadcast %3 : vector<1x32xf32> to vector<2x32xf32>
    %10 = arith.addf %8, %9 : vector<2x32xf32>
    %11 = arith.index_cast %5 : i32 to index
    %c0_10 = arith.constant 0 : index
    %12 = vector.load %arg0[%11, %c0_10] : memref<16x32xf32, #tpu.memory_space<vmem>>, vector<2x32xf32>
    %13 = arith.addf %12, %6 : vector<2x32xf32>
    %14 = arith.negf %13 : vector<2x32xf32>
    %15 = math.exp %14 : vector<2x32xf32>
    %cst_11 = arith.constant 1.000000e+00 : f32
    %16 = vector.broadcast %cst_11 : f32 to vector<2x32xf32>
    %17 = arith.addf %16, %15 : vector<2x32xf32>
    %18 = arith.divf %16, %17 : vector<2x32xf32>
    %19 = arith.index_cast %5 : i32 to index
    %c0_12 = arith.constant 0 : index
    %20 = vector.load %arg1[%19, %c0_12] : memref<16x32xf32, #tpu.memory_space<vmem>>, vector<2x32xf32>
    %21 = arith.addf %20, %7 : vector<2x32xf32>
    %22 = arith.negf %21 : vector<2x32xf32>
    %23 = math.exp %22 : vector<2x32xf32>
    %cst_13 = arith.constant 1.000000e+00 : f32
    %24 = vector.broadcast %cst_13 : f32 to vector<2x32xf32>
    %25 = arith.addf %24, %23 : vector<2x32xf32>
    %26 = arith.divf %24, %25 : vector<2x32xf32>
    %27 = arith.index_cast %5 : i32 to index
    %c0_14 = arith.constant 0 : index
    %28 = vector.load %arg2[%27, %c0_14] : memref<16x32xf32, #tpu.memory_space<vmem>>, vector<2x32xf32>
    %29 = arith.mulf %18, %10 : vector<2x32xf32>
    %30 = arith.addf %28, %29 : vector<2x32xf32>
    %31 = math.tanh %30 : vector<2x32xf32>
    %cst_15 = arith.constant 1.000000e+00 : f32
    %32 = vector.broadcast %cst_15 : f32 to vector<2x32xf32>
    %33 = arith.subf %32, %26 : vector<2x32xf32>
    %34 = arith.mulf %33, %31 : vector<2x32xf32>
    %35 = arith.mulf %26, %4 : vector<2x32xf32>
    %36 = arith.addf %34, %35 : vector<2x32xf32>
    %37 = arith.index_cast %5 : i32 to index
    %c0_16 = arith.constant 0 : index
    %38 = vector.load %arg10[%37, %c0_16] : memref<16x32xf32, #tpu.memory_space<vmem>>, vector<2x32xf32>
    tpu.vector_store %arg10[%37, %c0_16], %36 {strides = array<i32>} : memref<16x32xf32, #tpu.memory_space<vmem>>, vector<2x32xf32>,
    %c1_i32 = arith.constant 1 : i32
    %c2_i32_17 = arith.constant 2 : i32
    %39 = arith.muli %c1_i32, %c2_i32_17 : i32
    %cst_18 = arith.constant dense<0.000000e+00> : vector<2x32xf32>
    %40 = tpu.matmul %36, %0, %cst_18 {dimension_numbers = #tpu.dot_dimension_numbers<[1], [0], [0], [1], [0, 0, 1, 1], [], []>} : vector<2x32xf32>, vector<32x32xf32>, vector<2x32xf32> -> vector<2x32xf32>
    %cst_19 = arith.constant dense<0.000000e+00> : vector<2x32xf32>
    %41 = tpu.matmul %36, %1, %cst_19 {dimension_numbers = #tpu.dot_dimension_numbers<[1], [0], [0], [1], [0, 0, 1, 1], [], []>} : vector<2x32xf32>, vector<32x32xf32>, vector<2x32xf32> -> vector<2x32xf32>
    %cst_20 = arith.constant dense<0.000000e+00> : vector<2x32xf32>
    %42 = tpu.matmul %36, %2, %cst_20 {dimension_numbers = #tpu.dot_dimension_numbers<[1], [0], [0], [1], [0, 0, 1, 1], [], []>} : vector<2x32xf32>, vector<32x32xf32>, vector<2x32xf32> -> vector<2x32xf32>
    %43 = vector.broadcast %3 : vector<1x32xf32> to vector<2x32xf32>
    %44 = arith.addf %42, %43 : vector<2x32xf32>
    %45 = arith.index_cast %39 : i32 to index
    %c0_21 = arith.constant 0 : index
    %46 = vector.load %arg0[%45, %c0_21] : memref<16x32xf32, #tpu.memory_space<vmem>>, vector<2x32xf32>
    %47 = arith.addf %46, %40 : vector<2x32xf32>
    %48 = arith.negf %47 : vector<2x32xf32>
    %49 = math.exp %48 : vector<2x32xf32>
    %cst_22 = arith.constant 1.000000e+00 : f32
    %50 = vector.broadcast %cst_22 : f32 to vector<2x32xf32>
    %51 = arith.addf %50, %49 : vector<2x32xf32>
    %52 = arith.divf %50, %51 : vector<2x32xf32>
    %53 = arith.index_cast %39 : i32 to index
    %c0_23 = arith.constant 0 : index
    %54 = vector.load %arg1[%53, %c0_23] : memref<16x32xf32, #tpu.memory_space<vmem>>, vector<2x32xf32>
    %55 = arith.addf %54, %41 : vector<2x32xf32>
    %56 = arith.negf %55 : vector<2x32xf32>
    %57 = math.exp %56 : vector<2x32xf32>
    %cst_24 = arith.constant 1.000000e+00 : f32
    %58 = vector.broadcast %cst_24 : f32 to vector<2x32xf32>
    %59 = arith.addf %58, %57 : vector<2x32xf32>
    %60 = arith.divf %58, %59 : vector<2x32xf32>
    %61 = arith.index_cast %39 : i32 to index
    %c0_25 = arith.constant 0 : index
    %62 = vector.load %arg2[%61, %c0_25] : memref<16x32xf32, #tpu.memory_space<vmem>>, vector<2x32xf32>
    %63 = arith.mulf %52, %44 : vector<2x32xf32>
    %64 = arith.addf %62, %63 : vector<2x32xf32>
    %65 = math.tanh %64 : vector<2x32xf32>
    %cst_26 = arith.constant 1.000000e+00 : f32
    %66 = vector.broadcast %cst_26 : f32 to vector<2x32xf32>
    %67 = arith.subf %66, %60 : vector<2x32xf32>
    %68 = arith.mulf %67, %65 : vector<2x32xf32>
    %69 = arith.mulf %60, %36 : vector<2x32xf32>
    %70 = arith.addf %68, %69 : vector<2x32xf32>
    %71 = arith.index_cast %39 : i32 to index
    %c0_27 = arith.constant 0 : index
    %72 = vector.load %arg10[%71, %c0_27] : memref<16x32xf32, #tpu.memory_space<vmem>>, vector<2x32xf32>
    tpu.vector_store %arg10[%71, %c0_27], %70 {strides = array<i32>} : memref<16x32xf32, #tpu.memory_space<vmem>>, vector<2x32xf32>,
    %c2_i32_28 = arith.constant 2 : i32
    %c2_i32_29 = arith.constant 2 : i32
    %73 = arith.muli %c2_i32_28, %c2_i32_29 : i32
    %cst_30 = arith.constant dense<0.000000e+00> : vector<2x32xf32>
    %74 = tpu.matmul %70, %0, %cst_30 {dimension_numbers = #tpu.dot_dimension_numbers<[1], [0], [0], [1], [0, 0, 1, 1], [], []>} : vector<2x32xf32>, vector<32x32xf32>, vector<2x32xf32> -> vector<2x32xf32>
    %cst_31 = arith.constant dense<0.000000e+00> : vector<2x32xf32>
    %75 = tpu.matmul %70, %1, %cst_31 {dimension_numbers = #tpu.dot_dimension_numbers<[1], [0], [0], [1], [0, 0, 1, 1], [], []>} : vector<2x32xf32>, vector<32x32xf32>, vector<2x32xf32> -> vector<2x32xf32>
    %cst_32 = arith.constant dense<0.000000e+00> : vector<2x32xf32>
    %76 = tpu.matmul %70, %2, %cst_32 {dimension_numbers = #tpu.dot_dimension_numbers<[1], [0], [0], [1], [0, 0, 1, 1], [], []>} : vector<2x32xf32>, vector<32x32xf32>, vector<2x32xf32> -> vector<2x32xf32>
    %77 = vector.broadcast %3 : vector<1x32xf32> to vector<2x32xf32>
    %78 = arith.addf %76, %77 : vector<2x32xf32>
    %79 = arith.index_cast %73 : i32 to index
    %c0_33 = arith.constant 0 : index
    %80 = vector.load %arg0[%79, %c0_33] : memref<16x32xf32, #tpu.memory_space<vmem>>, vector<2x32xf32>
    %81 = arith.addf %80, %74 : vector<2x32xf32>
    %82 = arith.negf %81 : vector<2x32xf32>
    %83 = math.exp %82 : vector<2x32xf32>
    %cst_34 = arith.constant 1.000000e+00 : f32
    %84 = vector.broadcast %cst_34 : f32 to vector<2x32xf32>
    %85 = arith.addf %84, %83 : vector<2x32xf32>
    %86 = arith.divf %84, %85 : vector<2x32xf32>
    %87 = arith.index_cast %73 : i32 to index
    %c0_35 = arith.constant 0 : index
    %88 = vector.load %arg1[%87, %c0_35] : memref<16x32xf32, #tpu.memory_space<vmem>>, vector<2x32xf32>
    %89 = arith.addf %88, %75 : vector<2x32xf32>
    %90 = arith.negf %89 : vector<2x32xf32>
    %91 = math.exp %90 : vector<2x32xf32>
    %cst_36 = arith.constant 1.000000e+00 : f32
    %92 = vector.broadcast %cst_36 : f32 to vector<2x32xf32>
    %93 = arith.addf %92, %91 : vector<2x32xf32>
    %94 = arith.divf %92, %93 : vector<2x32xf32>
    %95 = arith.index_cast %73 : i32 to index
    %c0_37 = arith.constant 0 : index
    %96 = vector.load %arg2[%95, %c0_37] : memref<16x32xf32, #tpu.memory_space<vmem>>, vector<2x32xf32>
    %97 = arith.mulf %86, %78 : vector<2x32xf32>
    %98 = arith.addf %96, %97 : vector<2x32xf32>
    %99 = math.tanh %98 : vector<2x32xf32>
    %cst_38 = arith.constant 1.000000e+00 : f32
    %100 = vector.broadcast %cst_38 : f32 to vector<2x32xf32>
    %101 = arith.subf %100, %94 : vector<2x32xf32>
    %102 = arith.mulf %101, %99 : vector<2x32xf32>
    %103 = arith.mulf %94, %70 : vector<2x32xf32>
    %104 = arith.addf %102, %103 : vector<2x32xf32>
    %105 = arith.index_cast %73 : i32 to index
    %c0_39 = arith.constant 0 : index
    %106 = vector.load %arg10[%105, %c0_39] : memref<16x32xf32, #tpu.memory_space<vmem>>, vector<2x32xf32>
    tpu.vector_store %arg10[%105, %c0_39], %104 {strides = array<i32>} : memref<16x32xf32, #tpu.memory_space<vmem>>, vector<2x32xf32>,
    %c3_i32 = arith.constant 3 : i32
    %c2_i32_40 = arith.constant 2 : i32
    %107 = arith.muli %c3_i32, %c2_i32_40 : i32
    %cst_41 = arith.constant dense<0.000000e+00> : vector<2x32xf32>
    %108 = tpu.matmul %104, %0, %cst_41 {dimension_numbers = #tpu.dot_dimension_numbers<[1], [0], [0], [1], [0, 0, 1, 1], [], []>} : vector<2x32xf32>, vector<32x32xf32>, vector<2x32xf32> -> vector<2x32xf32>
    %cst_42 = arith.constant dense<0.000000e+00> : vector<2x32xf32>
    %109 = tpu.matmul %104, %1, %cst_42 {dimension_numbers = #tpu.dot_dimension_numbers<[1], [0], [0], [1], [0, 0, 1, 1], [], []>} : vector<2x32xf32>, vector<32x32xf32>, vector<2x32xf32> -> vector<2x32xf32>
    %cst_43 = arith.constant dense<0.000000e+00> : vector<2x32xf32>
    %110 = tpu.matmul %104, %2, %cst_43 {dimension_numbers = #tpu.dot_dimension_numbers<[1], [0], [0], [1], [0, 0, 1, 1], [], []>} : vector<2x32xf32>, vector<32x32xf32>, vector<2x32xf32> -> vector<2x32xf32>
    %111 = vector.broadcast %3 : vector<1x32xf32> to vector<2x32xf32>
    %112 = arith.addf %110, %111 : vector<2x32xf32>
    %113 = arith.index_cast %107 : i32 to index
    %c0_44 = arith.constant 0 : index
    %114 = vector.load %arg0[%113, %c0_44] : memref<16x32xf32, #tpu.memory_space<vmem>>, vector<2x32xf32>
    %115 = arith.addf %114, %108 : vector<2x32xf32>
    %116 = arith.negf %115 : vector<2x32xf32>
    %117 = math.exp %116 : vector<2x32xf32>
    %cst_45 = arith.constant 1.000000e+00 : f32
    %118 = vector.broadcast %cst_45 : f32 to vector<2x32xf32>
    %119 = arith.addf %118, %117 : vector<2x32xf32>
    %120 = arith.divf %118, %119 : vector<2x32xf32>
    %121 = arith.index_cast %107 : i32 to index
    %c0_46 = arith.constant 0 : index
    %122 = vector.load %arg1[%121, %c0_46] : memref<16x32xf32, #tpu.memory_space<vmem>>, vector<2x32xf32>
    %123 = arith.addf %122, %109 : vector<2x32xf32>
    %124 = arith.negf %123 : vector<2x32xf32>
    %125 = math.exp %124 : vector<2x32xf32>
    %cst_47 = arith.constant 1.000000e+00 : f32
    %126 = vector.broadcast %cst_47 : f32 to vector<2x32xf32>
    %127 = arith.addf %126, %125 : vector<2x32xf32>
    %128 = arith.divf %126, %127 : vector<2x32xf32>
    %129 = arith.index_cast %107 : i32 to index
    %c0_48 = arith.constant 0 : index
    %130 = vector.load %arg2[%129, %c0_48] : memref<16x32xf32, #tpu.memory_space<vmem>>, vector<2x32xf32>
    %131 = arith.mulf %120, %112 : vector<2x32xf32>
    %132 = arith.addf %130, %131 : vector<2x32xf32>
    %133 = math.tanh %132 : vector<2x32xf32>
    %cst_49 = arith.constant 1.000000e+00 : f32
    %134 = vector.broadcast %cst_49 : f32 to vector<2x32xf32>
    %135 = arith.subf %134, %128 : vector<2x32xf32>
    %136 = arith.mulf %135, %133 : vector<2x32xf32>
    %137 = arith.mulf %128, %104 : vector<2x32xf32>
    %138 = arith.addf %136, %137 : vector<2x32xf32>
    %139 = arith.index_cast %107 : i32 to index
    %c0_50 = arith.constant 0 : index
    %140 = vector.load %arg10[%139, %c0_50] : memref<16x32xf32, #tpu.memory_space<vmem>>, vector<2x32xf32>
    tpu.vector_store %arg10[%139, %c0_50], %138 {strides = array<i32>} : memref<16x32xf32, #tpu.memory_space<vmem>>, vector<2x32xf32>,
    %c4_i32 = arith.constant 4 : i32
    %c2_i32_51 = arith.constant 2 : i32
    %141 = arith.muli %c4_i32, %c2_i32_51 : i32
    %cst_52 = arith.constant dense<0.000000e+00> : vector<2x32xf32>
    %142 = tpu.matmul %138, %0, %cst_52 {dimension_numbers = #tpu.dot_dimension_numbers<[1], [0], [0], [1], [0, 0, 1, 1], [], []>} : vector<2x32xf32>, vector<32x32xf32>, vector<2x32xf32> -> vector<2x32xf32>
    %cst_53 = arith.constant dense<0.000000e+00> : vector<2x32xf32>
    %143 = tpu.matmul %138, %1, %cst_53 {dimension_numbers = #tpu.dot_dimension_numbers<[1], [0], [0], [1], [0, 0, 1, 1], [], []>} : vector<2x32xf32>, vector<32x32xf32>, vector<2x32xf32> -> vector<2x32xf32>
    %cst_54 = arith.constant dense<0.000000e+00> : vector<2x32xf32>
    %144 = tpu.matmul %138, %2, %cst_54 {dimension_numbers = #tpu.dot_dimension_numbers<[1], [0], [0], [1], [0, 0, 1, 1], [], []>} : vector<2x32xf32>, vector<32x32xf32>, vector<2x32xf32> -> vector<2x32xf32>
    %145 = vector.broadcast %3 : vector<1x32xf32> to vector<2x32xf32>
    %146 = arith.addf %144, %145 : vector<2x32xf32>
    %147 = arith.index_cast %141 : i32 to index
    %c0_55 = arith.constant 0 : index
    %148 = vector.load %arg0[%147, %c0_55] : memref<16x32xf32, #tpu.memory_space<vmem>>, vector<2x32xf32>
    %149 = arith.addf %148, %142 : vector<2x32xf32>
    %150 = arith.negf %149 : vector<2x32xf32>
    %151 = math.exp %150 : vector<2x32xf32>
    %cst_56 = arith.constant 1.000000e+00 : f32
    %152 = vector.broadcast %cst_56 : f32 to vector<2x32xf32>
    %153 = arith.addf %152, %151 : vector<2x32xf32>
    %154 = arith.divf %152, %153 : vector<2x32xf32>
    %155 = arith.index_cast %141 : i32 to index
    %c0_57 = arith.constant 0 : index
    %156 = vector.load %arg1[%155, %c0_57] : memref<16x32xf32, #tpu.memory_space<vmem>>, vector<2x32xf32>
    %157 = arith.addf %156, %143 : vector<2x32xf32>
    %158 = arith.negf %157 : vector<2x32xf32>
    %159 = math.exp %158 : vector<2x32xf32>
    %cst_58 = arith.constant 1.000000e+00 : f32
    %160 = vector.broadcast %cst_58 : f32 to vector<2x32xf32>
    %161 = arith.addf %160, %159 : vector<2x32xf32>
    %162 = arith.divf %160, %161 : vector<2x32xf32>
    %163 = arith.index_cast %141 : i32 to index
    %c0_59 = arith.constant 0 : index
    %164 = vector.load %arg2[%163, %c0_59] : memref<16x32xf32, #tpu.memory_space<vmem>>, vector<2x32xf32>
    %165 = arith.mulf %154, %146 : vector<2x32xf32>
    %166 = arith.addf %164, %165 : vector<2x32xf32>
    %167 = math.tanh %166 : vector<2x32xf32>
    %cst_60 = arith.constant 1.000000e+00 : f32
    %168 = vector.broadcast %cst_60 : f32 to vector<2x32xf32>
    %169 = arith.subf %168, %162 : vector<2x32xf32>
    %170 = arith.mulf %169, %167 : vector<2x32xf32>
    %171 = arith.mulf %162, %138 : vector<2x32xf32>
    %172 = arith.addf %170, %171 : vector<2x32xf32>
    %173 = arith.index_cast %141 : i32 to index
    %c0_61 = arith.constant 0 : index
    %174 = vector.load %arg10[%173, %c0_61] : memref<16x32xf32, #tpu.memory_space<vmem>>, vector<2x32xf32>
    tpu.vector_store %arg10[%173, %c0_61], %172 {strides = array<i32>} : memref<16x32xf32, #tpu.memory_space<vmem>>, vector<2x32xf32>,
    %c5_i32 = arith.constant 5 : i32
    %c2_i32_62 = arith.constant 2 : i32
    %175 = arith.muli %c5_i32, %c2_i32_62 : i32
    %cst_63 = arith.constant dense<0.000000e+00> : vector<2x32xf32>
    %176 = tpu.matmul %172, %0, %cst_63 {dimension_numbers = #tpu.dot_dimension_numbers<[1], [0], [0], [1], [0, 0, 1, 1], [], []>} : vector<2x32xf32>, vector<32x32xf32>, vector<2x32xf32> -> vector<2x32xf32>
    %cst_64 = arith.constant dense<0.000000e+00> : vector<2x32xf32>
    %177 = tpu.matmul %172, %1, %cst_64 {dimension_numbers = #tpu.dot_dimension_numbers<[1], [0], [0], [1], [0, 0, 1, 1], [], []>} : vector<2x32xf32>, vector<32x32xf32>, vector<2x32xf32> -> vector<2x32xf32>
    %cst_65 = arith.constant dense<0.000000e+00> : vector<2x32xf32>
    %178 = tpu.matmul %172, %2, %cst_65 {dimension_numbers = #tpu.dot_dimension_numbers<[1], [0], [0], [1], [0, 0, 1, 1], [], []>} : vector<2x32xf32>, vector<32x32xf32>, vector<2x32xf32> -> vector<2x32xf32>
    %179 = vector.broadcast %3 : vector<1x32xf32> to vector<2x32xf32>
    %180 = arith.addf %178, %179 : vector<2x32xf32>
    %181 = arith.index_cast %175 : i32 to index
    %c0_66 = arith.constant 0 : index
    %182 = vector.load %arg0[%181, %c0_66] : memref<16x32xf32, #tpu.memory_space<vmem>>, vector<2x32xf32>
    %183 = arith.addf %182, %176 : vector<2x32xf32>
    %184 = arith.negf %183 : vector<2x32xf32>
    %185 = math.exp %184 : vector<2x32xf32>
    %cst_67 = arith.constant 1.000000e+00 : f32
    %186 = vector.broadcast %cst_67 : f32 to vector<2x32xf32>
    %187 = arith.addf %186, %185 : vector<2x32xf32>
    %188 = arith.divf %186, %187 : vector<2x32xf32>
    %189 = arith.index_cast %175 : i32 to index
    %c0_68 = arith.constant 0 : index
    %190 = vector.load %arg1[%189, %c0_68] : memref<16x32xf32, #tpu.memory_space<vmem>>, vector<2x32xf32>
    %191 = arith.addf %190, %177 : vector<2x32xf32>
    %192 = arith.negf %191 : vector<2x32xf32>
    %193 = math.exp %192 : vector<2x32xf32>
    %cst_69 = arith.constant 1.000000e+00 : f32
    %194 = vector.broadcast %cst_69 : f32 to vector<2x32xf32>
    %195 = arith.addf %194, %193 : vector<2x32xf32>
    %196 = arith.divf %194, %195 : vector<2x32xf32>
    %197 = arith.index_cast %175 : i32 to index
    %c0_70 = arith.constant 0 : index
    %198 = vector.load %arg2[%197, %c0_70] : memref<16x32xf32, #tpu.memory_space<vmem>>, vector<2x32xf32>
    %199 = arith.mulf %188, %180 : vector<2x32xf32>
    %200 = arith.addf %198, %199 : vector<2x32xf32>
    %201 = math.tanh %200 : vector<2x32xf32>
    %cst_71 = arith.constant 1.000000e+00 : f32
    %202 = vector.broadcast %cst_71 : f32 to vector<2x32xf32>
    %203 = arith.subf %202, %196 : vector<2x32xf32>
    %204 = arith.mulf %203, %201 : vector<2x32xf32>
    %205 = arith.mulf %196, %172 : vector<2x32xf32>
    %206 = arith.addf %204, %205 : vector<2x32xf32>
    %207 = arith.index_cast %175 : i32 to index
    %c0_72 = arith.constant 0 : index
    %208 = vector.load %arg10[%207, %c0_72] : memref<16x32xf32, #tpu.memory_space<vmem>>, vector<2x32xf32>
    tpu.vector_store %arg10[%207, %c0_72], %206 {strides = array<i32>} : memref<16x32xf32, #tpu.memory_space<vmem>>, vector<2x32xf32>,
    %c6_i32 = arith.constant 6 : i32
    %c2_i32_73 = arith.constant 2 : i32
    %209 = arith.muli %c6_i32, %c2_i32_73 : i32
    %cst_74 = arith.constant dense<0.000000e+00> : vector<2x32xf32>
    %210 = tpu.matmul %206, %0, %cst_74 {dimension_numbers = #tpu.dot_dimension_numbers<[1], [0], [0], [1], [0, 0, 1, 1], [], []>} : vector<2x32xf32>, vector<32x32xf32>, vector<2x32xf32> -> vector<2x32xf32>
    %cst_75 = arith.constant dense<0.000000e+00> : vector<2x32xf32>
    %211 = tpu.matmul %206, %1, %cst_75 {dimension_numbers = #tpu.dot_dimension_numbers<[1], [0], [0], [1], [0, 0, 1, 1], [], []>} : vector<2x32xf32>, vector<32x32xf32>, vector<2x32xf32> -> vector<2x32xf32>
    %cst_76 = arith.constant dense<0.000000e+00> : vector<2x32xf32>
    %212 = tpu.matmul %206, %2, %cst_76 {dimension_numbers = #tpu.dot_dimension_numbers<[1], [0], [0], [1], [0, 0, 1, 1], [], []>} : vector<2x32xf32>, vector<32x32xf32>, vector<2x32xf32> -> vector<2x32xf32>
    %213 = vector.broadcast %3 : vector<1x32xf32> to vector<2x32xf32>
    %214 = arith.addf %212, %213 : vector<2x32xf32>
    %215 = arith.index_cast %209 : i32 to index
    %c0_77 = arith.constant 0 : index
    %216 = vector.load %arg0[%215, %c0_77] : memref<16x32xf32, #tpu.memory_space<vmem>>, vector<2x32xf32>
    %217 = arith.addf %216, %210 : vector<2x32xf32>
    %218 = arith.negf %217 : vector<2x32xf32>
    %219 = math.exp %218 : vector<2x32xf32>
    %cst_78 = arith.constant 1.000000e+00 : f32
    %220 = vector.broadcast %cst_78 : f32 to vector<2x32xf32>
    %221 = arith.addf %220, %219 : vector<2x32xf32>
    %222 = arith.divf %220, %221 : vector<2x32xf32>
    %223 = arith.index_cast %209 : i32 to index
    %c0_79 = arith.constant 0 : index
    %224 = vector.load %arg1[%223, %c0_79] : memref<16x32xf32, #tpu.memory_space<vmem>>, vector<2x32xf32>
    %225 = arith.addf %224, %211 : vector<2x32xf32>
    %226 = arith.negf %225 : vector<2x32xf32>
    %227 = math.exp %226 : vector<2x32xf32>
    %cst_80 = arith.constant 1.000000e+00 : f32
    %228 = vector.broadcast %cst_80 : f32 to vector<2x32xf32>
    %229 = arith.addf %228, %227 : vector<2x32xf32>
    %230 = arith.divf %228, %229 : vector<2x32xf32>
    %231 = arith.index_cast %209 : i32 to index
    %c0_81 = arith.constant 0 : index
    %232 = vector.load %arg2[%231, %c0_81] : memref<16x32xf32, #tpu.memory_space<vmem>>, vector<2x32xf32>
    %233 = arith.mulf %222, %214 : vector<2x32xf32>
    %234 = arith.addf %232, %233 : vector<2x32xf32>
    %235 = math.tanh %234 : vector<2x32xf32>
    %cst_82 = arith.constant 1.000000e+00 : f32
    %236 = vector.broadcast %cst_82 : f32 to vector<2x32xf32>
    %237 = arith.subf %236, %230 : vector<2x32xf32>
    %238 = arith.mulf %237, %235 : vector<2x32xf32>
    %239 = arith.mulf %230, %206 : vector<2x32xf32>
    %240 = arith.addf %238, %239 : vector<2x32xf32>
    %241 = arith.index_cast %209 : i32 to index
    %c0_83 = arith.constant 0 : index
    %242 = vector.load %arg10[%241, %c0_83] : memref<16x32xf32, #tpu.memory_space<vmem>>, vector<2x32xf32>
    tpu.vector_store %arg10[%241, %c0_83], %240 {strides = array<i32>} : memref<16x32xf32, #tpu.memory_space<vmem>>, vector<2x32xf32>,
    %c7_i32 = arith.constant 7 : i32
    %c2_i32_84 = arith.constant 2 : i32
    %243 = arith.muli %c7_i32, %c2_i32_84 : i32
    %cst_85 = arith.constant dense<0.000000e+00> : vector<2x32xf32>
    %244 = tpu.matmul %240, %0, %cst_85 {dimension_numbers = #tpu.dot_dimension_numbers<[1], [0], [0], [1], [0, 0, 1, 1], [], []>} : vector<2x32xf32>, vector<32x32xf32>, vector<2x32xf32> -> vector<2x32xf32>
    %cst_86 = arith.constant dense<0.000000e+00> : vector<2x32xf32>
    %245 = tpu.matmul %240, %1, %cst_86 {dimension_numbers = #tpu.dot_dimension_numbers<[1], [0], [0], [1], [0, 0, 1, 1], [], []>} : vector<2x32xf32>, vector<32x32xf32>, vector<2x32xf32> -> vector<2x32xf32>
    %cst_87 = arith.constant dense<0.000000e+00> : vector<2x32xf32>
    %246 = tpu.matmul %240, %2, %cst_87 {dimension_numbers = #tpu.dot_dimension_numbers<[1], [0], [0], [1], [0, 0, 1, 1], [], []>} : vector<2x32xf32>, vector<32x32xf32>, vector<2x32xf32> -> vector<2x32xf32>
    %247 = vector.broadcast %3 : vector<1x32xf32> to vector<2x32xf32>
    %248 = arith.addf %246, %247 : vector<2x32xf32>
    %249 = arith.index_cast %243 : i32 to index
    %c0_88 = arith.constant 0 : index
    %250 = vector.load %arg0[%249, %c0_88] : memref<16x32xf32, #tpu.memory_space<vmem>>, vector<2x32xf32>
    %251 = arith.addf %250, %244 : vector<2x32xf32>
    %252 = arith.negf %251 : vector<2x32xf32>
    %253 = math.exp %252 : vector<2x32xf32>
    %cst_89 = arith.constant 1.000000e+00 : f32
    %254 = vector.broadcast %cst_89 : f32 to vector<2x32xf32>
    %255 = arith.addf %254, %253 : vector<2x32xf32>
    %256 = arith.divf %254, %255 : vector<2x32xf32>
    %257 = arith.index_cast %243 : i32 to index
    %c0_90 = arith.constant 0 : index
    %258 = vector.load %arg1[%257, %c0_90] : memref<16x32xf32, #tpu.memory_space<vmem>>, vector<2x32xf32>
    %259 = arith.addf %258, %245 : vector<2x32xf32>
    %260 = arith.negf %259 : vector<2x32xf32>
    %261 = math.exp %260 : vector<2x32xf32>
    %cst_91 = arith.constant 1.000000e+00 : f32
    %262 = vector.broadcast %cst_91 : f32 to vector<2x32xf32>
    %263 = arith.addf %262, %261 : vector<2x32xf32>
    %264 = arith.divf %262, %263 : vector<2x32xf32>
    %265 = arith.index_cast %243 : i32 to index
    %c0_92 = arith.constant 0 : index
    %266 = vector.load %arg2[%265, %c0_92] : memref<16x32xf32, #tpu.memory_space<vmem>>, vector<2x32xf32>
    %267 = arith.mulf %256, %248 : vector<2x32xf32>
    %268 = arith.addf %266, %267 : vector<2x32xf32>
    %269 = math.tanh %268 : vector<2x32xf32>
    %cst_93 = arith.constant 1.000000e+00 : f32
    %270 = vector.broadcast %cst_93 : f32 to vector<2x32xf32>
    %271 = arith.subf %270, %264 : vector<2x32xf32>
    %272 = arith.mulf %271, %269 : vector<2x32xf32>
    %273 = arith.mulf %264, %240 : vector<2x32xf32>
    %274 = arith.addf %272, %273 : vector<2x32xf32>
    %275 = arith.index_cast %243 : i32 to index
    %c0_94 = arith.constant 0 : index
    %276 = vector.load %arg10[%275, %c0_94] : memref<16x32xf32, #tpu.memory_space<vmem>>, vector<2x32xf32>
    tpu.vector_store %arg10[%275, %c0_94], %274 {strides = array<i32>} : memref<16x32xf32, #tpu.memory_space<vmem>>, vector<2x32xf32>,
    %c8_i32 = arith.constant 8 : i32
    %c0_95 = arith.constant 0 : index
    %c0_96 = arith.constant 0 : index
    %277 = vector.load %arg10[%c0_95, %c0_96] : memref<16x32xf32, #tpu.memory_space<vmem>>, vector<16x32xf32>
    %c0_97 = arith.constant 0 : index
    %c0_98 = arith.constant 0 : index
    %278 = vector.load %arg7[%c0_97, %c0_98] : memref<32x10xf32, #tpu.memory_space<vmem>>, vector<32x10xf32>
    %cst_99 = arith.constant dense<0.000000e+00> : vector<16x10xf32>
    %279 = tpu.matmul %277, %278, %cst_99 {dimension_numbers = #tpu.dot_dimension_numbers<[1], [0], [0], [1], [0, 0, 1, 1], [], []>} : vector<16x32xf32>, vector<32x10xf32>, vector<16x10xf32> -> vector<16x10xf32>
    %c0_100 = arith.constant 0 : index
    %c0_101 = arith.constant 0 : index
    %280 = vector.load %arg8[%c0_100, %c0_101] : memref<1x10xf32, #tpu.memory_space<vmem>>, vector<1x10xf32>
    %281 = vector.broadcast %280 : vector<1x10xf32> to vector<16x10xf32>
    %282 = arith.addf %279, %281 : vector<16x10xf32>
    %c0_102 = arith.constant 0 : index
    %c0_103 = arith.constant 0 : index
    %283 = vector.load %arg9[%c0_102, %c0_103] : memref<16x10xf32, #tpu.memory_space<vmem>>, vector<16x10xf32>
    tpu.vector_store %arg9[%c0_102, %c0_103], %282 {strides = array<i32>} : memref<16x10xf32, #tpu.memory_space<vmem>>, vector<16x10xf32>,
    return
  }
}

</mosaic_0001>

<llo_original>
// kernel: gru_model_forward.1
$region0: #{gru_model_forward.1}
  #allocation0 [shape = 'u32[]', space=smem, size = 0x4, offset = 0x4, fixed_abs, tag = 'smem constant byte address 0x4 - core index']
  #allocation1 [shape = 'u32[144,128]{1,0:T(1,128)}', space=vmem, size = 0x12000, scoped, tag = 'internal scratch']
  #allocation2 [shape = 'f32[16,32]{1,0:T(8,128)}', space=vmem, size = 0x2000, scoped, tag = 'scratch operand']
  %s0 = inlined_call_operand.vmem [shape: f32[16,32], index: 0, kind: input, shape index: {}]
  %s1 = inlined_call_operand.vmem [shape: f32[16,32], index: 1, kind: input, shape index: {}]
  %s2 = inlined_call_operand.vmem [shape: f32[16,32], index: 2, kind: input, shape index: {}]
  %s3 = inlined_call_operand.vmem [shape: f32[32,32], index: 3, kind: input, shape index: {}]
  %s4 = inlined_call_operand.vmem [shape: f32[32,32], index: 4, kind: input, shape index: {}]
  %s5 = inlined_call_operand.vmem [shape: f32[32,32], index: 5, kind: input, shape index: {}]
  %s6 = inlined_call_operand.vmem [shape: f32[1,32], index: 6, kind: input, shape index: {}]
  %s7 = inlined_call_operand.vmem [shape: f32[32,10], index: 7, kind: input, shape index: {}]
  %s8 = inlined_call_operand.vmem [shape: f32[1,10], index: 8, kind: input, shape index: {}]
  %s9 = inlined_call_operand.vmem [shape: f32[16,10], index: 9, kind: output, shape index: {}]
  %s10 = sld [smem:[#allocation0]]
  $region46: #{gru_model_forward.1} parent=0
    _
  %s12 = ssub.s32 1, %s10
  %s13 = scalar_select 0, %s12, %s10
  // Predicated region
  $region2: #{gru_model_forward.1} parent=0 // pred_check
    _
  $region3: #{gru_model_forward.1} parent=0 // pred_check_branch
    %15 = sbr.rel (0) target = $region5
  $region4: #{gru_model_forward.1} parent=0 // pred_region
    _
  $region5: #{gru_model_forward.1} parent=0 // pred_fallthru
    _
  // Predicated region
  $region6: #{gru_model_forward.1} parent=0 // pred_check
    _
  $region7: #{gru_model_forward.1} parent=0 // pred_check_branch
    %17 = sbr.rel (0) target = $region9
  $region8: #{gru_model_forward.1} parent=0 // pred_region
    _
  $region9: #{gru_model_forward.1} parent=0 // pred_fallthru
    _
  // Predicated region
  $region10: #{gru_model_forward.1} parent=0 // pred_check
    _
  $region11: #{gru_model_forward.1} parent=0 // pred_check_branch
    %19 = sbr.rel (0) target = $region13
  $region12: #{gru_model_forward.1} parent=0 // pred_region
    _
  $region13: #{gru_model_forward.1} parent=0 // pred_fallthru
    _
  // Predicated region
  $region14: #{gru_model_forward.1} parent=0 // pred_check
    _
  $region15: #{gru_model_forward.1} parent=0 // pred_check_branch
    %21 = sbr.rel (0) target = $region17
  $region16: #{gru_model_forward.1} parent=0 // pred_region
    _
  $region17: #{gru_model_forward.1} parent=0 // pred_fallthru
    _
  // Predicated region
  $region18: #{gru_model_forward.1} parent=0 // pred_check
    _
  $region19: #{gru_model_forward.1} parent=0 // pred_check_branch
    %23 = sbr.rel (0) target = $region21
  $region20: #{gru_model_forward.1} parent=0 // pred_region
    _
  $region21: #{gru_model_forward.1} parent=0 // pred_fallthru
    _
  // Predicated region
  $region22: #{gru_model_forward.1} parent=0 // pred_check
    _
  $region23: #{gru_model_forward.1} parent=0 // pred_check_branch
    %25 = sbr.rel (0) target = $region25
  $region24: #{gru_model_forward.1} parent=0 // pred_region
    _
  $region25: #{gru_model_forward.1} parent=0 // pred_fallthru
    _
  // Predicated region
  $region26: #{gru_model_forward.1} parent=0 // pred_check
    _
  $region27: #{gru_model_forward.1} parent=0 // pred_check_branch
    %27 = sbr.rel (0) target = $region29
  $region28: #{gru_model_forward.1} parent=0 // pred_region
    _
  $region29: #{gru_model_forward.1} parent=0 // pred_fallthru
    _
  // Predicated region
  $region30: #{gru_model_forward.1} parent=0 // pred_check
    _
  $region31: #{gru_model_forward.1} parent=0 // pred_check_branch
    %29 = sbr.rel (0) target = $region33
  $region32: #{gru_model_forward.1} parent=0 // pred_region
    _
  $region33: #{gru_model_forward.1} parent=0 // pred_fallthru
    _
  // Predicated region
  $region34: #{gru_model_forward.1} parent=0 // pred_check
    _
  $region35: #{gru_model_forward.1} parent=0 // pred_check_branch
    %31 = sbr.rel (0) target = $region37
  $region36: #{gru_model_forward.1} parent=0 // pred_region
    _
  $region37: #{gru_model_forward.1} parent=0 // pred_fallthru
    _
  %v32 = vld [vmem:[%s3] sm:$0xff]
  %v33 = vld [vmem:[%s3 + $0x8] sm:$0xff]
  %v34 = vld [vmem:[%s3 + $0x10] sm:$0xff]
  %v35 = vld [vmem:[%s3 + $0x18] sm:$0xff]
  %v36 = vld [vmem:[%s4] sm:$0xff]
  %v37 = vld [vmem:[%s4 + $0x8] sm:$0xff]
  %v38 = vld [vmem:[%s4 + $0x10] sm:$0xff]
  %v39 = vld [vmem:[%s4 + $0x18] sm:$0xff]
  %v40 = vld [vmem:[%s5] sm:$0xff]
  %v41 = vld [vmem:[%s5 + $0x8] sm:$0xff]
  %v42 = vld [vmem:[%s5 + $0x10] sm:$0xff]
  %v43 = vld [vmem:[%s5 + $0x18] sm:$0xff]
  %v44 = vld [vmem:[%s6] sm:$0x1]
  %vm45 = vcmask 261120
  %v47 = vsel %vm45, 0.0, 0
  %49 = vmatprep.subr.mxu0 0.0
  %50 = vmatpush1.msra.mxu0 %v32
  %51 = vmatprep.subr.mxu0 0.0
  %52 = vmatpush1.msra.mxu0 %v33
  %53 = vmatprep.subr.mxu0 0.0
  %54 = vmatpush1.msra.mxu0 %v34
  %55 = vmatprep.subr.mxu0 0.0
  %56 = vmatpush1.msra.mxu0 %v35
  %57 = vmatprep.subr.mxu0 0.0
  %58 = vmatpush1.msra.mxu0 0.0
  %59 = vmatprep.subr.mxu0 0.0
  %60 = vmatpush1.msra.mxu0 0.0
  %61 = vmatprep.subr.mxu0 0.0
  %62 = vmatpush1.msra.mxu0 0.0
  %63 = vmatprep.subr.mxu0 0.0
  %64 = vmatpush1.msra.mxu0 0.0
  %65 = vmatprep.subr.mxu0 0.0
  %66 = vmatpush1.msra.mxu0 0.0
  %67 = vmatprep.subr.mxu0 0.0
  %68 = vmatpush1.msra.mxu0 0.0
  %69 = vmatprep.subr.mxu0 0.0
  %70 = vmatpush1.msra.mxu0 0.0
  %71 = vmatprep.subr.mxu0 0.0
  %72 = vmatpush1.msra.mxu0 0.0
  %73 = vmatprep.subr.mxu0 0.0
  %74 = vmatpush1.msra.mxu0 0.0
  %75 = vmatprep.subr.mxu0 0.0
  %76 = vmatpush1.msra.mxu0 0.0
  %77 = vmatprep.subr.mxu0 0.0
  %78 = vmatpush1.msra.mxu0 0.0
  %79 = vmatprep.subr.mxu0 0.0
  %80 = vmatpush1.msra.mxu0 0.0
  %81 = vmatprep.subr.mxu0 0.0
  %82 = vmatpush1.msra.mxu0 0.0
  %83 = vmatprep.subr.mxu0 0.0
  %84 = vmatpush1.msra.mxu0 0.0
  %85 = vmatprep.subr.mxu0 0.0
  %86 = vmatpush1.msra.mxu0 0.0
  %87 = vmatprep.subr.mxu0 0.0
  %88 = vmatpush1.msra.mxu0 0.0
  %89 = vmatprep.subr.mxu0 0.0
  %90 = vmatpush1.msra.mxu0 0.0
  %91 = vmatprep.subr.mxu0 0.0
  %92 = vmatpush1.msra.mxu0 0.0
  %93 = vmatprep.subr.mxu0 0.0
  %94 = vmatpush1.msra.mxu0 0.0
  %95 = vmatprep.subr.mxu0 0.0
  %96 = vmatpush1.msra.mxu0 0.0
  %97 = vmatprep.subr.mxu0 0.0
  %98 = vmatpush1.msra.mxu0 0.0
  %99 = vmatprep.subr.mxu0 0.0
  %100 = vmatpush1.msra.mxu0 0.0
  %101 = vmatprep.subr.mxu0 0.0
  %102 = vmatpush1.msra.mxu0 0.0
  %103 = vmatprep.subr.mxu0 0.0
  %104 = vmatpush1.msra.mxu0 0.0
  %105 = vmatprep.subr.mxu0 0.0
  %106 = vmatpush1.msra.mxu0 0.0
  %107 = vmatprep.subr.mxu0 0.0
  %108 = vmatpush1.msra.mxu0 0.0
  %109 = vmatprep.subr.mxu0 0.0
  %110 = vmatpush1.msra.mxu0 0.0
  %111 = vmatprep.subr.mxu0 0.0
  %112 = vmatpush1.msra.mxu0 0.0
  %113 = vmatprep.mubr.f32.mxu0 0.0
  %114 = vmatmul.mubr.f32.gmra.mrb[0].mxu0 %v47
  %v115 = vpop.f32.mrb[0].mxu0
  %v116 = vadd.f32 0.0, %v115
  %v117 = vpop.f32.mrb[0].mxu0
  %118 = vdwg.mxu0
  %119 = vmatprep.subr.mxu0 0.0
  %120 = vmatpush1.msra.mxu0 %v36
  %121 = vmatprep.subr.mxu0 0.0
  %122 = vmatpush1.msra.mxu0 %v37
  %123 = vmatprep.subr.mxu0 0.0
  %124 = vmatpush1.msra.mxu0 %v38
  %125 = vmatprep.subr.mxu0 0.0
  %126 = vmatpush1.msra.mxu0 %v39
  %127 = vmatprep.subr.mxu0 0.0
  %128 = vmatpush1.msra.mxu0 0.0
  %129 = vmatprep.subr.mxu0 0.0
  %130 = vmatpush1.msra.mxu0 0.0
  %131 = vmatprep.subr.mxu0 0.0
  %132 = vmatpush1.msra.mxu0 0.0
  %133 = vmatprep.subr.mxu0 0.0
  %134 = vmatpush1.msra.mxu0 0.0
  %135 = vmatprep.subr.mxu0 0.0
  %136 = vmatpush1.msra.mxu0 0.0
  %137 = vmatprep.subr.mxu0 0.0
  %138 = vmatpush1.msra.mxu0 0.0
  %139 = vmatprep.subr.mxu0 0.0
  %140 = vmatpush1.msra.mxu0 0.0
  %141 = vmatprep.subr.mxu0 0.0
  %142 = vmatpush1.msra.mxu0 0.0
  %143 = vmatprep.subr.mxu0 0.0
  %144 = vmatpush1.msra.mxu0 0.0
  %145 = vmatprep.subr.mxu0 0.0
  %146 = vmatpush1.msra.mxu0 0.0
  %147 = vmatprep.subr.mxu0 0.0
  %148 = vmatpush1.msra.mxu0 0.0
  %149 = vmatprep.subr.mxu0 0.0
  %150 = vmatpush1.msra.mxu0 0.0
  %151 = vmatprep.subr.mxu0 0.0
  %152 = vmatpush1.msra.mxu0 0.0
  %153 = vmatprep.subr.mxu0 0.0
  %154 = vmatpush1.msra.mxu0 0.0
  %155 = vmatprep.subr.mxu0 0.0
  %156 = vmatpush1.msra.mxu0 0.0
  %157 = vmatprep.subr.mxu0 0.0
  %158 = vmatpush1.msra.mxu0 0.0
  %159 = vmatprep.subr.mxu0 0.0
  %160 = vmatpush1.msra.mxu0 0.0
  %161 = vmatprep.subr.mxu0 0.0
  %162 = vmatpush1.msra.mxu0 0.0
  %163 = vmatprep.subr.mxu0 0.0
  %164 = vmatpush1.msra.mxu0 0.0
  %165 = vmatprep.subr.mxu0 0.0
  %166 = vmatpush1.msra.mxu0 0.0
  %167 = vmatprep.subr.mxu0 0.0
  %168 = vmatpush1.msra.mxu0 0.0
  %169 = vmatprep.subr.mxu0 0.0
  %170 = vmatpush1.msra.mxu0 0.0
  %171 = vmatprep.subr.mxu0 0.0
  %172 = vmatpush1.msra.mxu0 0.0
  %173 = vmatprep.subr.mxu0 0.0
  %174 = vmatpush1.msra.mxu0 0.0
  %175 = vmatprep.subr.mxu0 0.0
  %176 = vmatpush1.msra.mxu0 0.0
  %177 = vmatprep.subr.mxu0 0.0
  %178 = vmatpush1.msra.mxu0 0.0
  %179 = vmatprep.subr.mxu0 0.0
  %180 = vmatpush1.msra.mxu0 0.0
  %181 = vmatprep.subr.mxu0 0.0
  %182 = vmatpush1.msra.mxu0 0.0
  %183 = vmatprep.mubr.f32.mxu0 0.0
  %184 = vmatmul.mubr.f32.gmra.mrb[0].mxu0 %v47
  %v185 = vpop.f32.mrb[0].mxu0
  %v186 = vadd.f32 0.0, %v185
  %v187 = vpop.f32.mrb[0].mxu0
  %188 = vdwg.mxu0
  %v190 = vlaneseq
  %v191 = vshrl.u32 %v190, 7
  %v192 = vsub.s32 0, %v191
  %v193 = vrot.slane %v44, %v192
  %195 = vmatprep.subr.mxu0 0.0
  %196 = vmatpush1.msra.mxu0 %v40
  %197 = vmatprep.subr.mxu0 0.0
  %198 = vmatpush1.msra.mxu0 %v41
  %199 = vmatprep.subr.mxu0 0.0
  %200 = vmatpush1.msra.mxu0 %v42
  %201 = vmatprep.subr.mxu0 0.0
  %202 = vmatpush1.msra.mxu0 %v43
  %203 = vmatprep.subr.mxu0 0.0
  %204 = vmatpush1.msra.mxu0 0.0
  %205 = vmatprep.subr.mxu0 0.0
  %206 = vmatpush1.msra.mxu0 0.0
  %207 = vmatprep.subr.mxu0 0.0
  %208 = vmatpush1.msra.mxu0 0.0
  %209 = vmatprep.subr.mxu0 0.0
  %210 = vmatpush1.msra.mxu0 0.0
  %211 = vmatprep.subr.mxu0 0.0
  %212 = vmatpush1.msra.mxu0 0.0
  %213 = vmatprep.subr.mxu0 0.0
  %214 = vmatpush1.msra.mxu0 0.0
  %215 = vmatprep.subr.mxu0 0.0
  %216 = vmatpush1.msra.mxu0 0.0
  %217 = vmatprep.subr.mxu0 0.0
  %218 = vmatpush1.msra.mxu0 0.0
  %219 = vmatprep.subr.mxu0 0.0
  %220 = vmatpush1.msra.mxu0 0.0
  %221 = vmatprep.subr.mxu0 0.0
  %222 = vmatpush1.msra.mxu0 0.0
  %223 = vmatprep.subr.mxu0 0.0
  %224 = vmatpush1.msra.mxu0 0.0
  %225 = vmatprep.subr.mxu0 0.0
  %226 = vmatpush1.msra.mxu0 0.0
  %227 = vmatprep.subr.mxu0 0.0
  %228 = vmatpush1.msra.mxu0 0.0
  %229 = vmatprep.subr.mxu0 0.0
  %230 = vmatpush1.msra.mxu0 0.0
  %231 = vmatprep.subr.mxu0 0.0
  %232 = vmatpush1.msra.mxu0 0.0
  %233 = vmatprep.subr.mxu0 0.0
  %234 = vmatpush1.msra.mxu0 0.0
  %235 = vmatprep.subr.mxu0 0.0
  %236 = vmatpush1.msra.mxu0 0.0
  %237 = vmatprep.subr.mxu0 0.0
  %238 = vmatpush1.msra.mxu0 0.0
  %239 = vmatprep.subr.mxu0 0.0
  %240 = vmatpush1.msra.mxu0 0.0
  %241 = vmatprep.subr.mxu0 0.0
  %242 = vmatpush1.msra.mxu0 0.0
  %243 = vmatprep.subr.mxu0 0.0
  %244 = vmatpush1.msra.mxu0 0.0
  %245 = vmatprep.subr.mxu0 0.0
  %246 = vmatpush1.msra.mxu0 0.0
  %247 = vmatprep.subr.mxu0 0.0
  %248 = vmatpush1.msra.mxu0 0.0
  %249 = vmatprep.subr.mxu0 0.0
  %250 = vmatpush1.msra.mxu0 0.0
  %251 = vmatprep.subr.mxu0 0.0
  %252 = vmatpush1.msra.mxu0 0.0
  %253 = vmatprep.subr.mxu0 0.0
  %254 = vmatpush1.msra.mxu0 0.0
  %255 = vmatprep.subr.mxu0 0.0
  %256 = vmatpush1.msra.mxu0 0.0
  %257 = vmatprep.subr.mxu0 0.0
  %258 = vmatpush1.msra.mxu0 0.0
  %259 = vmatprep.mubr.f32.mxu0 0.0
  %260 = vmatmul.mubr.f32.gmra.mrb[0].mxu0 %v47
  %v261 = vpop.f32.mrb[0].mxu0
  %v262 = vadd.f32 %v193, %v261
  %v263 = vpop.f32.mrb[0].mxu0
  %264 = vdwg.mxu0
  %v265 = vld [vmem:[%s0] sm:$0x3]
  %v266 = vadd.f32 %v265, %v116
  %v267 = vxor.u32 %v266, 2147483648
  %v268 = vmul.f32 %v267, 1.442695
  %v269 = vpow.pop %v268
  %v270 = vadd.f32 %v269, 1.0
  %v271 = vrcp.pop %v270
  %v272 = vmul.f32 1.0, %v271
  %v273 = vld [vmem:[%s1] sm:$0x3]
  %v274 = vadd.f32 %v273, %v186
  %v275 = vxor.u32 %v274, 2147483648
  %v276 = vmul.f32 %v275, 1.442695
  %v277 = vpow.pop %v276
  %v278 = vadd.f32 %v277, 1.0
  %v279 = vrcp.pop %v278
  %v280 = vmul.f32 1.0, %v279
  %v281 = vld [vmem:[%s2] sm:$0x3]
  %v282 = vmul.f32 %v272, %v262
  %v283 = vadd.f32 %v281, %v282
  %v284 = vtanh.pop %v283
  %v285 = vsub.f32 1.0, %v280
  %v286 = vmul.f32 %v285, %v284
  %v287 = vmul.f32 %v280, 0.0
  %v288 = vadd.f32 %v286, %v287
  %vm289 = vcmask 254976
  %290 = vst.msk [vmem:[#allocation2] sm:$0x3] %vm289, %v288
  %v292 = vsel %vm45, %v288, 0
  %294 = vmatprep.subr.mxu0 0.0
  %295 = vmatpush1.msra.mxu0 %v32
  %296 = vmatprep.subr.mxu0 0.0
  %297 = vmatpush1.msra.mxu0 %v33
  %298 = vmatprep.subr.mxu0 0.0
  %299 = vmatpush1.msra.mxu0 %v34
  %300 = vmatprep.subr.mxu0 0.0
  %301 = vmatpush1.msra.mxu0 %v35
  %302 = vmatprep.subr.mxu0 0.0
  %303 = vmatpush1.msra.mxu0 0.0
  %304 = vmatprep.subr.mxu0 0.0
  %305 = vmatpush1.msra.mxu0 0.0
  %306 = vmatprep.subr.mxu0 0.0
  %307 = vmatpush1.msra.mxu0 0.0
  %308 = vmatprep.subr.mxu0 0.0
  %309 = vmatpush1.msra.mxu0 0.0
  %310 = vmatprep.subr.mxu0 0.0
  %311 = vmatpush1.msra.mxu0 0.0
  %312 = vmatprep.subr.mxu0 0.0
  %313 = vmatpush1.msra.mxu0 0.0
  %314 = vmatprep.subr.mxu0 0.0
  %315 = vmatpush1.msra.mxu0 0.0
  %316 = vmatprep.subr.mxu0 0.0
  %317 = vmatpush1.msra.mxu0 0.0
  %318 = vmatprep.subr.mxu0 0.0
  %319 = vmatpush1.msra.mxu0 0.0
  %320 = vmatprep.subr.mxu0 0.0
  %321 = vmatpush1.msra.mxu0 0.0
  %322 = vmatprep.subr.mxu0 0.0
  %323 = vmatpush1.msra.mxu0 0.0
  %324 = vmatprep.subr.mxu0 0.0
  %325 = vmatpush1.msra.mxu0 0.0
  %326 = vmatprep.subr.mxu0 0.0
  %327 = vmatpush1.msra.mxu0 0.0
  %328 = vmatprep.subr.mxu0 0.0
  %329 = vmatpush1.msra.mxu0 0.0
  %330 = vmatprep.subr.mxu0 0.0
  %331 = vmatpush1.msra.mxu0 0.0
  %332 = vmatprep.subr.mxu0 0.0
  %333 = vmatpush1.msra.mxu0 0.0
  %334 = vmatprep.subr.mxu0 0.0
  %335 = vmatpush1.msra.mxu0 0.0
  %336 = vmatprep.subr.mxu0 0.0
  %337 = vmatpush1.msra.mxu0 0.0
  %338 = vmatprep.subr.mxu0 0.0
  %339 = vmatpush1.msra.mxu0 0.0
  %340 = vmatprep.subr.mxu0 0.0
  %341 = vmatpush1.msra.mxu0 0.0
  %342 = vmatprep.subr.mxu0 0.0
  %343 = vmatpush1.msra.mxu0 0.0
  %344 = vmatprep.subr.mxu0 0.0
  %345 = vmatpush1.msra.mxu0 0.0
  %346 = vmatprep.subr.mxu0 0.0
  %347 = vmatpush1.msra.mxu0 0.0
  %348 = vmatprep.subr.mxu0 0.0
  %349 = vmatpush1.msra.mxu0 0.0
  %350 = vmatprep.subr.mxu0 0.0
  %351 = vmatpush1.msra.mxu0 0.0
  %352 = vmatprep.subr.mxu0 0.0
  %353 = vmatpush1.msra.mxu0 0.0
  %354 = vmatprep.subr.mxu0 0.0
  %355 = vmatpush1.msra.mxu0 0.0
  %356 = vmatprep.subr.mxu0 0.0
  %357 = vmatpush1.msra.mxu0 0.0
  %358 = vmatprep.mubr.f32.mxu0 0.0
  %359 = vmatmul.mubr.f32.gmra.mrb[0].mxu0 %v292
  %v360 = vpop.f32.mrb[0].mxu0
  %v361 = vadd.f32 0.0, %v360
  %v362 = vpop.f32.mrb[0].mxu0
  %363 = vdwg.mxu0
  %364 = vmatprep.subr.mxu0 0.0
  %365 = vmatpush1.msra.mxu0 %v36
  %366 = vmatprep.subr.mxu0 0.0
  %367 = vmatpush1.msra.mxu0 %v37
  %368 = vmatprep.subr.mxu0 0.0
  %369 = vmatpush1.msra.mxu0 %v38
  %370 = vmatprep.subr.mxu0 0.0
  %371 = vmatpush1.msra.mxu0 %v39
  %372 = vmatprep.subr.mxu0 0.0
  %373 = vmatpush1.msra.mxu0 0.0
  %374 = vmatprep.subr.mxu0 0.0
  %375 = vmatpush1.msra.mxu0 0.0
  %376 = vmatprep.subr.mxu0 0.0
  %377 = vmatpush1.msra.mxu0 0.0
  %378 = vmatprep.subr.mxu0 0.0
  %379 = vmatpush1.msra.mxu0 0.0
  %380 = vmatprep.subr.mxu0 0.0
  %381 = vmatpush1.msra.mxu0 0.0
  %382 = vmatprep.subr.mxu0 0.0
  %383 = vmatpush1.msra.mxu0 0.0
  %384 = vmatprep.subr.mxu0 0.0
  %385 = vmatpush1.msra.mxu0 0.0
  %386 = vmatprep.subr.mxu0 0.0
  %387 = vmatpush1.msra.mxu0 0.0
  %388 = vmatprep.subr.mxu0 0.0
  %389 = vmatpush1.msra.mxu0 0.0
  %390 = vmatprep.subr.mxu0 0.0
  %391 = vmatpush1.msra.mxu0 0.0
  %392 = vmatprep.subr.mxu0 0.0
  %393 = vmatpush1.msra.mxu0 0.0
  %394 = vmatprep.subr.mxu0 0.0
  %395 = vmatpush1.msra.mxu0 0.0
  %396 = vmatprep.subr.mxu0 0.0
  %397 = vmatpush1.msra.mxu0 0.0
  %398 = vmatprep.subr.mxu0 0.0
  %399 = vmatpush1.msra.mxu0 0.0
  %400 = vmatprep.subr.mxu0 0.0
  %401 = vmatpush1.msra.mxu0 0.0
  %402 = vmatprep.subr.mxu0 0.0
  %403 = vmatpush1.msra.mxu0 0.0
  %404 = vmatprep.subr.mxu0 0.0
  %405 = vmatpush1.msra.mxu0 0.0
  %406 = vmatprep.subr.mxu0 0.0
  %407 = vmatpush1.msra.mxu0 0.0
  %408 = vmatprep.subr.mxu0 0.0
  %409 = vmatpush1.msra.mxu0 0.0
  %410 = vmatprep.subr.mxu0 0.0
  %411 = vmatpush1.msra.mxu0 0.0
  %412 = vmatprep.subr.mxu0 0.0
  %413 = vmatpush1.msra.mxu0 0.0
  %414 = vmatprep.subr.mxu0 0.0
  %415 = vmatpush1.msra.mxu0 0.0
  %416 = vmatprep.subr.mxu0 0.0
  %417 = vmatpush1.msra.mxu0 0.0
  %418 = vmatprep.subr.mxu0 0.0
  %419 = vmatpush1.msra.mxu0 0.0
  %420 = vmatprep.subr.mxu0 0.0
  %421 = vmatpush1.msra.mxu0 0.0
  %422 = vmatprep.subr.mxu0 0.0
  %423 = vmatpush1.msra.mxu0 0.0
  %424 = vmatprep.subr.mxu0 0.0
  %425 = vmatpush1.msra.mxu0 0.0
  %426 = vmatprep.subr.mxu0 0.0
  %427 = vmatpush1.msra.mxu0 0.0
  %428 = vmatprep.mubr.f32.mxu0 0.0
  %429 = vmatmul.mubr.f32.gmra.mrb[0].mxu0 %v292
  %v430 = vpop.f32.mrb[0].mxu0
  %v431 = vadd.f32 0.0, %v430
  %v432 = vpop.f32.mrb[0].mxu0
  %433 = vdwg.mxu0
  %434 = vmatprep.subr.mxu0 0.0
  %435 = vmatpush1.msra.mxu0 %v40
  %436 = vmatprep.subr.mxu0 0.0
  %437 = vmatpush1.msra.mxu0 %v41
  %438 = vmatprep.subr.mxu0 0.0
  %439 = vmatpush1.msra.mxu0 %v42
  %440 = vmatprep.subr.mxu0 0.0
  %441 = vmatpush1.msra.mxu0 %v43
  %442 = vmatprep.subr.mxu0 0.0
  %443 = vmatpush1.msra.mxu0 0.0
  %444 = vmatprep.subr.mxu0 0.0
  %445 = vmatpush1.msra.mxu0 0.0
  %446 = vmatprep.subr.mxu0 0.0
  %447 = vmatpush1.msra.mxu0 0.0
  %448 = vmatprep.subr.mxu0 0.0
  %449 = vmatpush1.msra.mxu0 0.0
  %450 = vmatprep.subr.mxu0 0.0
  %451 = vmatpush1.msra.mxu0 0.0
  %452 = vmatprep.subr.mxu0 0.0
  %453 = vmatpush1.msra.mxu0 0.0
  %454 = vmatprep.subr.mxu0 0.0
  %455 = vmatpush1.msra.mxu0 0.0
  %456 = vmatprep.subr.mxu0 0.0
  %457 = vmatpush1.msra.mxu0 0.0
  %458 = vmatprep.subr.mxu0 0.0
  %459 = vmatpush1.msra.mxu0 0.0
  %460 = vmatprep.subr.mxu0 0.0
  %461 = vmatpush1.msra.mxu0 0.0
  %462 = vmatprep.subr.mxu0 0.0
  %463 = vmatpush1.msra.mxu0 0.0
  %464 = vmatprep.subr.mxu0 0.0
  %465 = vmatpush1.msra.mxu0 0.0
  %466 = vmatprep.subr.mxu0 0.0
  %467 = vmatpush1.msra.mxu0 0.0
  %468 = vmatprep.subr.mxu0 0.0
  %469 = vmatpush1.msra.mxu0 0.0
  %470 = vmatprep.subr.mxu0 0.0
  %471 = vmatpush1.msra.mxu0 0.0
  %472 = vmatprep.subr.mxu0 0.0
  %473 = vmatpush1.msra.mxu0 0.0
  %474 = vmatprep.subr.mxu0 0.0
  %475 = vmatpush1.msra.mxu0 0.0
  %476 = vmatprep.subr.mxu0 0.0
  %477 = vmatpush1.msra.mxu0 0.0
  %478 = vmatprep.subr.mxu0 0.0
  %479 = vmatpush1.msra.mxu0 0.0
  %480 = vmatprep.subr.mxu0 0.0
  %481 = vmatpush1.msra.mxu0 0.0
  %482 = vmatprep.subr.mxu0 0.0
  %483 = vmatpush1.msra.mxu0 0.0
  %484 = vmatprep.subr.mxu0 0.0
  %485 = vmatpush1.msra.mxu0 0.0
  %486 = vmatprep.subr.mxu0 0.0
  %487 = vmatpush1.msra.mxu0 0.0
  %488 = vmatprep.subr.mxu0 0.0
  %489 = vmatpush1.msra.mxu0 0.0
  %490 = vmatprep.subr.mxu0 0.0
  %491 = vmatpush1.msra.mxu0 0.0
  %492 = vmatprep.subr.mxu0 0.0
  %493 = vmatpush1.msra.mxu0 0.0
  %494 = vmatprep.subr.mxu0 0.0
  %495 = vmatpush1.msra.mxu0 0.0
  %496 = vmatprep.subr.mxu0 0.0
  %497 = vmatpush1.msra.mxu0 0.0
  %498 = vmatprep.mubr.f32.mxu0 0.0
  %499 = vmatmul.mubr.f32.gmra.mrb[0].mxu0 %v292
  %v500 = vpop.f32.mrb[0].mxu0
  %v501 = vadd.f32 %v193, %v500
  %v502 = vpop.f32.mrb[0].mxu0
  %503 = vdwg.mxu0
  %v504 = vld [vmem:[%s0 + $0x2] sm:$0x3]
  %v505 = vadd.f32 %v504, %v361
  %v506 = vxor.u32 %v505, 2147483648
  %v507 = vmul.f32 %v506, 1.442695
  %v508 = vpow.pop %v507
  %v509 = vadd.f32 %v508, 1.0
  %v510 = vrcp.pop %v509
  %v511 = vmul.f32 1.0, %v510
  %v512 = vld [vmem:[%s1 + $0x2] sm:$0x3]
  %v513 = vadd.f32 %v512, %v431
  %v514 = vxor.u32 %v513, 2147483648
  %v515 = vmul.f32 %v514, 1.442695
  %v516 = vpow.pop %v515
  %v517 = vadd.f32 %v516, 1.0
  %v518 = vrcp.pop %v517
  %v519 = vmul.f32 1.0, %v518
  %v520 = vld [vmem:[%s2 + $0x2] sm:$0x3]
  %v521 = vmul.f32 %v511, %v501
  %v522 = vadd.f32 %v520, %v521
  %v523 = vtanh.pop %v522
  %v524 = vsub.f32 1.0, %v519
  %v525 = vmul.f32 %v524, %v523
  %v526 = vmul.f32 %v519, %v288
  %v527 = vadd.f32 %v525, %v526
  %528 = vst.msk [vmem:[#allocation2 + $0x2] sm:$0x3] %vm289, %v527
  %v530 = vsel %vm45, %v527, 0
  %532 = vmatprep.subr.mxu0 0.0
  %533 = vmatpush1.msra.mxu0 %v32
  %534 = vmatprep.subr.mxu0 0.0
  %535 = vmatpush1.msra.mxu0 %v33
  %536 = vmatprep.subr.mxu0 0.0
  %537 = vmatpush1.msra.mxu0 %v34
  %538 = vmatprep.subr.mxu0 0.0
  %539 = vmatpush1.msra.mxu0 %v35
  %540 = vmatprep.subr.mxu0 0.0
  %541 = vmatpush1.msra.mxu0 0.0
  %542 = vmatprep.subr.mxu0 0.0
  %543 = vmatpush1.msra.mxu0 0.0
  %544 = vmatprep.subr.mxu0 0.0
  %545 = vmatpush1.msra.mxu0 0.0
  %546 = vmatprep.subr.mxu0 0.0
  %547 = vmatpush1.msra.mxu0 0.0
  %548 = vmatprep.subr.mxu0 0.0
  %549 = vmatpush1.msra.mxu0 0.0
  %550 = vmatprep.subr.mxu0 0.0
  %551 = vmatpush1.msra.mxu0 0.0
  %552 = vmatprep.subr.mxu0 0.0
  %553 = vmatpush1.msra.mxu0 0.0
  %554 = vmatprep.subr.mxu0 0.0
  %555 = vmatpush1.msra.mxu0 0.0
  %556 = vmatprep.subr.mxu0 0.0
  %557 = vmatpush1.msra.mxu0 0.0
  %558 = vmatprep.subr.mxu0 0.0
  %559 = vmatpush1.msra.mxu0 0.0
  %560 = vmatprep.subr.mxu0 0.0
  %561 = vmatpush1.msra.mxu0 0.0
  %562 = vmatprep.subr.mxu0 0.0
  %563 = vmatpush1.msra.mxu0 0.0
  %564 = vmatprep.subr.mxu0 0.0
  %565 = vmatpush1.msra.mxu0 0.0
  %566 = vmatprep.subr.mxu0 0.0
  %567 = vmatpush1.msra.mxu0 0.0
  %568 = vmatprep.subr.mxu0 0.0
  %569 = vmatpush1.msra.mxu0 0.0
  %570 = vmatprep.subr.mxu0 0.0
  %571 = vmatpush1.msra.mxu0 0.0
  %572 = vmatprep.subr.mxu0 0.0
  %573 = vmatpush1.msra.mxu0 0.0
  %574 = vmatprep.subr.mxu0 0.0
  %575 = vmatpush1.msra.mxu0 0.0
  %576 = vmatprep.subr.mxu0 0.0
  %577 = vmatpush1.msra.mxu0 0.0
  %578 = vmatprep.subr.mxu0 0.0
  %579 = vmatpush1.msra.mxu0 0.0
  %580 = vmatprep.subr.mxu0 0.0
  %581 = vmatpush1.msra.mxu0 0.0
  %582 = vmatprep.subr.mxu0 0.0
  %583 = vmatpush1.msra.mxu0 0.0
  %584 = vmatprep.subr.mxu0 0.0
  %585 = vmatpush1.msra.mxu0 0.0
  %586 = vmatprep.subr.mxu0 0.0
  %587 = vmatpush1.msra.mxu0 0.0
  %588 = vmatprep.subr.mxu0 0.0
  %589 = vmatpush1.msra.mxu0 0.0
  %590 = vmatprep.subr.mxu0 0.0
  %591 = vmatpush1.msra.mxu0 0.0
  %592 = vmatprep.subr.mxu0 0.0
  %593 = vmatpush1.msra.mxu0 0.0
  %594 = vmatprep.subr.mxu0 0.0
  %595 = vmatpush1.msra.mxu0 0.0
  %596 = vmatprep.mubr.f32.mxu0 0.0
  %597 = vmatmul.mubr.f32.gmra.mrb[0].mxu0 %v530
  %v598 = vpop.f32.mrb[0].mxu0
  %v599 = vadd.f32 0.0, %v598
  %v600 = vpop.f32.mrb[0].mxu0
  %601 = vdwg.mxu0
  %602 = vmatprep.subr.mxu0 0.0
  %603 = vmatpush1.msra.mxu0 %v36
  %604 = vmatprep.subr.mxu0 0.0
  %605 = vmatpush1.msra.mxu0 %v37
  %606 = vmatprep.subr.mxu0 0.0
  %607 = vmatpush1.msra.mxu0 %v38
  %608 = vmatprep.subr.mxu0 0.0
  %609 = vmatpush1.msra.mxu0 %v39
  %610 = vmatprep.subr.mxu0 0.0
  %611 = vmatpush1.msra.mxu0 0.0
  %612 = vmatprep.subr.mxu0 0.0
  %613 = vmatpush1.msra.mxu0 0.0
  %614 = vmatprep.subr.mxu0 0.0
  %615 = vmatpush1.msra.mxu0 0.0
  %616 = vmatprep.subr.mxu0 0.0
  %617 = vmatpush1.msra.mxu0 0.0
  %618 = vmatprep.subr.mxu0 0.0
  %619 = vmatpush1.msra.mxu0 0.0
  %620 = vmatprep.subr.mxu0 0.0
  %621 = vmatpush1.msra.mxu0 0.0
  %622 = vmatprep.subr.mxu0 0.0
  %623 = vmatpush1.msra.mxu0 0.0
  %624 = vmatprep.subr.mxu0 0.0
  %625 = vmatpush1.msra.mxu0 0.0
  %626 = vmatprep.subr.mxu0 0.0
  %627 = vmatpush1.msra.mxu0 0.0
  %628 = vmatprep.subr.mxu0 0.0
  %629 = vmatpush1.msra.mxu0 0.0
  %630 = vmatprep.subr.mxu0 0.0
  %631 = vmatpush1.msra.mxu0 0.0
  %632 = vmatprep.subr.mxu0 0.0
  %633 = vmatpush1.msra.mxu0 0.0
  %634 = vmatprep.subr.mxu0 0.0
  %635 = vmatpush1.msra.mxu0 0.0
  %636 = vmatprep.subr.mxu0 0.0
  %637 = vmatpush1.msra.mxu0 0.0
  %638 = vmatprep.subr.mxu0 0.0
  %639 = vmatpush1.msra.mxu0 0.0
  %640 = vmatprep.subr.mxu0 0.0
  %641 = vmatpush1.msra.mxu0 0.0
  %642 = vmatprep.subr.mxu0 0.0
  %643 = vmatpush1.msra.mxu0 0.0
  %644 = vmatprep.subr.mxu0 0.0
  %645 = vmatpush1.msra.mxu0 0.0
  %646 = vmatprep.subr.mxu0 0.0
  %647 = vmatpush1.msra.mxu0 0.0
  %648 = vmatprep.subr.mxu0 0.0
  %649 = vmatpush1.msra.mxu0 0.0
  %650 = vmatprep.subr.mxu0 0.0
  %651 = vmatpush1.msra.mxu0 0.0
  %652 = vmatprep.subr.mxu0 0.0
  %653 = vmatpush1.msra.mxu0 0.0
  %654 = vmatprep.subr.mxu0 0.0
  %655 = vmatpush1.msra.mxu0 0.0
  %656 = vmatprep.subr.mxu0 0.0
  %657 = vmatpush1.msra.mxu0 0.0
  %658 = vmatprep.subr.mxu0 0.0
  %659 = vmatpush1.msra.mxu0 0.0
  %660 = vmatprep.subr.mxu0 0.0
  %661 = vmatpush1.msra.mxu0 0.0
  %662 = vmatprep.subr.mxu0 0.0
  %663 = vmatpush1.msra.mxu0 0.0
  %664 = vmatprep.subr.mxu0 0.0
  %665 = vmatpush1.msra.mxu0 0.0
  %666 = vmatprep.mubr.f32.mxu0 0.0
  %667 = vmatmul.mubr.f32.gmra.mrb[0].mxu0 %v530
  %v668 = vpop.f32.mrb[0].mxu0
  %v669 = vadd.f32 0.0, %v668
  %v670 = vpop.f32.mrb[0].mxu0
  %671 = vdwg.mxu0
  %672 = vmatprep.subr.mxu0 0.0
  %673 = vmatpush1.msra.mxu0 %v40
  %674 = vmatprep.subr.mxu0 0.0
  %675 = vmatpush1.msra.mxu0 %v41
  %676 = vmatprep.subr.mxu0 0.0
  %677 = vmatpush1.msra.mxu0 %v42
  %678 = vmatprep.subr.mxu0 0.0
  %679 = vmatpush1.msra.mxu0 %v43
  %680 = vmatprep.subr.mxu0 0.0
  %681 = vmatpush1.msra.mxu0 0.0
  %682 = vmatprep.subr.mxu0 0.0
  %683 = vmatpush1.msra.mxu0 0.0
  %684 = vmatprep.subr.mxu0 0.0
  %685 = vmatpush1.msra.mxu0 0.0
  %686 = vmatprep.subr.mxu0 0.0
  %687 = vmatpush1.msra.mxu0 0.0
  %688 = vmatprep.subr.mxu0 0.0
  %689 = vmatpush1.msra.mxu0 0.0
  %690 = vmatprep.subr.mxu0 0.0
  %691 = vmatpush1.msra.mxu0 0.0
  %692 = vmatprep.subr.mxu0 0.0
  %693 = vmatpush1.msra.mxu0 0.0
  %694 = vmatprep.subr.mxu0 0.0
  %695 = vmatpush1.msra.mxu0 0.0
  %696 = vmatprep.subr.mxu0 0.0
  %697 = vmatpush1.msra.mxu0 0.0
  %698 = vmatprep.subr.mxu0 0.0
  %699 = vmatpush1.msra.mxu0 0.0
  %700 = vmatprep.subr.mxu0 0.0
  %701 = vmatpush1.msra.mxu0 0.0
  %702 = vmatprep.subr.mxu0 0.0
  %703 = vmatpush1.msra.mxu0 0.0
  %704 = vmatprep.subr.mxu0 0.0
  %705 = vmatpush1.msra.mxu0 0.0
  %706 = vmatprep.subr.mxu0 0.0
  %707 = vmatpush1.msra.mxu0 0.0
  %708 = vmatprep.subr.mxu0 0.0
  %709 = vmatpush1.msra.mxu0 0.0
  %710 = vmatprep.subr.mxu0 0.0
  %711 = vmatpush1.msra.mxu0 0.0
  %712 = vmatprep.subr.mxu0 0.0
  %713 = vmatpush1.msra.mxu0 0.0
  %714 = vmatprep.subr.mxu0 0.0
  %715 = vmatpush1.msra.mxu0 0.0
  %716 = vmatprep.subr.mxu0 0.0
  %717 = vmatpush1.msra.mxu0 0.0
  %718 = vmatprep.subr.mxu0 0.0
  %719 = vmatpush1.msra.mxu0 0.0
  %720 = vmatprep.subr.mxu0 0.0
  %721 = vmatpush1.msra.mxu0 0.0
  %722 = vmatprep.subr.mxu0 0.0
  %723 = vmatpush1.msra.mxu0 0.0
  %724 = vmatprep.subr.mxu0 0.0
  %725 = vmatpush1.msra.mxu0 0.0
  %726 = vmatprep.subr.mxu0 0.0
  %727 = vmatpush1.msra.mxu0 0.0
  %728 = vmatprep.subr.mxu0 0.0
  %729 = vmatpush1.msra.mxu0 0.0
  %730 = vmatprep.subr.mxu0 0.0
  %731 = vmatpush1.msra.mxu0 0.0
  %732 = vmatprep.subr.mxu0 0.0
  %733 = vmatpush1.msra.mxu0 0.0
  %734 = vmatprep.subr.mxu0 0.0
  %735 = vmatpush1.msra.mxu0 0.0
  %736 = vmatprep.mubr.f32.mxu0 0.0
  %737 = vmatmul.mubr.f32.gmra.mrb[0].mxu0 %v530
  %v738 = vpop.f32.mrb[0].mxu0
  %v739 = vadd.f32 %v193, %v738
  %v740 = vpop.f32.mrb[0].mxu0
  %741 = vdwg.mxu0
  %v742 = vld [vmem:[%s0 + $0x4] sm:$0x3]
  %v743 = vadd.f32 %v742, %v599
  %v744 = vxor.u32 %v743, 2147483648
  %v745 = vmul.f32 %v744, 1.442695
  %v746 = vpow.pop %v745
  %v747 = vadd.f32 %v746, 1.0
  %v748 = vrcp.pop %v747
  %v749 = vmul.f32 1.0, %v748
  %v750 = vld [vmem:[%s1 + $0x4] sm:$0x3]
  %v751 = vadd.f32 %v750, %v669
  %v752 = vxor.u32 %v751, 2147483648
  %v753 = vmul.f32 %v752, 1.442695
  %v754 = vpow.pop %v753
  %v755 = vadd.f32 %v754, 1.0
  %v756 = vrcp.pop %v755
  %v757 = vmul.f32 1.0, %v756
  %v758 = vld [vmem:[%s2 + $0x4] sm:$0x3]
  %v759 = vmul.f32 %v749, %v739
  %v760 = vadd.f32 %v758, %v759
  %v761 = vtanh.pop %v760
  %v762 = vsub.f32 1.0, %v757
  %v763 = vmul.f32 %v762, %v761
  %v764 = vmul.f32 %v757, %v527
  %v765 = vadd.f32 %v763, %v764
  %766 = vst.msk [vmem:[#allocation2 + $0x4] sm:$0x3] %vm289, %v765
  %v768 = vsel %vm45, %v765, 0
  %770 = vmatprep.subr.mxu0 0.0
  %771 = vmatpush1.msra.mxu0 %v32
  %772 = vmatprep.subr.mxu0 0.0
  %773 = vmatpush1.msra.mxu0 %v33
  %774 = vmatprep.subr.mxu0 0.0
  %775 = vmatpush1.msra.mxu0 %v34
  %776 = vmatprep.subr.mxu0 0.0
  %777 = vmatpush1.msra.mxu0 %v35
  %778 = vmatprep.subr.mxu0 0.0
  %779 = vmatpush1.msra.mxu0 0.0
  %780 = vmatprep.subr.mxu0 0.0
  %781 = vmatpush1.msra.mxu0 0.0
  %782 = vmatprep.subr.mxu0 0.0
  %783 = vmatpush1.msra.mxu0 0.0
  %784 = vmatprep.subr.mxu0 0.0
  %785 = vmatpush1.msra.mxu0 0.0
  %786 = vmatprep.subr.mxu0 0.0
  %787 = vmatpush1.msra.mxu0 0.0
  %788 = vmatprep.subr.mxu0 0.0
  %789 = vmatpush1.msra.mxu0 0.0
  %790 = vmatprep.subr.mxu0 0.0
  %791 = vmatpush1.msra.mxu0 0.0
  %792 = vmatprep.subr.mxu0 0.0
  %793 = vmatpush1.msra.mxu0 0.0
  %794 = vmatprep.subr.mxu0 0.0
  %795 = vmatpush1.msra.mxu0 0.0
  %796 = vmatprep.subr.mxu0 0.0
  %797 = vmatpush1.msra.mxu0 0.0
  %798 = vmatprep.subr.mxu0 0.0
  %799 = vmatpush1.msra.mxu0 0.0
  %800 = vmatprep.subr.mxu0 0.0
  %801 = vmatpush1.msra.mxu0 0.0
  %802 = vmatprep.subr.mxu0 0.0
  %803 = vmatpush1.msra.mxu0 0.0
  %804 = vmatprep.subr.mxu0 0.0
  %805 = vmatpush1.msra.mxu0 0.0
  %806 = vmatprep.subr.mxu0 0.0
  %807 = vmatpush1.msra.mxu0 0.0
  %808 = vmatprep.subr.mxu0 0.0
  %809 = vmatpush1.msra.mxu0 0.0
  %810 = vmatprep.subr.mxu0 0.0
  %811 = vmatpush1.msra.mxu0 0.0
  %812 = vmatprep.subr.mxu0 0.0
  %813 = vmatpush1.msra.mxu0 0.0
  %814 = vmatprep.subr.mxu0 0.0
  %815 = vmatpush1.msra.mxu0 0.0
  %816 = vmatprep.subr.mxu0 0.0
  %817 = vmatpush1.msra.mxu0 0.0
  %818 = vmatprep.subr.mxu0 0.0
  %819 = vmatpush1.msra.mxu0 0.0
  %820 = vmatprep.subr.mxu0 0.0
  %821 = vmatpush1.msra.mxu0 0.0
  %822 = vmatprep.subr.mxu0 0.0
  %823 = vmatpush1.msra.mxu0 0.0
  %824 = vmatprep.subr.mxu0 0.0
  %825 = vmatpush1.msra.mxu0 0.0
  %826 = vmatprep.subr.mxu0 0.0
  %827 = vmatpush1.msra.mxu0 0.0
  %828 = vmatprep.subr.mxu0 0.0
  %829 = vmatpush1.msra.mxu0 0.0
  %830 = vmatprep.subr.mxu0 0.0
  %831 = vmatpush1.msra.mxu0 0.0
  %832 = vmatprep.subr.mxu0 0.0
  %833 = vmatpush1.msra.mxu0 0.0
  %834 = vmatprep.mubr.f32.mxu0 0.0
  %835 = vmatmul.mubr.f32.gmra.mrb[0].mxu0 %v768
  %v836 = vpop.f32.mrb[0].mxu0
  %v837 = vadd.f32 0.0, %v836
  %v838 = vpop.f32.mrb[0].mxu0
  %839 = vdwg.mxu0
  %840 = vmatprep.subr.mxu0 0.0
  %841 = vmatpush1.msra.mxu0 %v36
  %842 = vmatprep.subr.mxu0 0.0
  %843 = vmatpush1.msra.mxu0 %v37
  %844 = vmatprep.subr.mxu0 0.0
  %845 = vmatpush1.msra.mxu0 %v38
  %846 = vmatprep.subr.mxu0 0.0
  %847 = vmatpush1.msra.mxu0 %v39
  %848 = vmatprep.subr.mxu0 0.0
  %849 = vmatpush1.msra.mxu0 0.0
  %850 = vmatprep.subr.mxu0 0.0
  %851 = vmatpush1.msra.mxu0 0.0
  %852 = vmatprep.subr.mxu0 0.0
  %853 = vmatpush1.msra.mxu0 0.0
  %854 = vmatprep.subr.mxu0 0.0
  %855 = vmatpush1.msra.mxu0 0.0
  %856 = vmatprep.subr.mxu0 0.0
  %857 = vmatpush1.msra.mxu0 0.0
  %858 = vmatprep.subr.mxu0 0.0
  %859 = vmatpush1.msra.mxu0 0.0
  %860 = vmatprep.subr.mxu0 0.0
  %861 = vmatpush1.msra.mxu0 0.0
  %862 = vmatprep.subr.mxu0 0.0
  %863 = vmatpush1.msra.mxu0 0.0
  %864 = vmatprep.subr.mxu0 0.0
  %865 = vmatpush1.msra.mxu0 0.0
  %866 = vmatprep.subr.mxu0 0.0
  %867 = vmatpush1.msra.mxu0 0.0
  %868 = vmatprep.subr.mxu0 0.0
  %869 = vmatpush1.msra.mxu0 0.0
  %870 = vmatprep.subr.mxu0 0.0
  %871 = vmatpush1.msra.mxu0 0.0
  %872 = vmatprep.subr.mxu0 0.0
  %873 = vmatpush1.msra.mxu0 0.0
  %874 = vmatprep.subr.mxu0 0.0
  %875 = vmatpush1.msra.mxu0 0.0
  %876 = vmatprep.subr.mxu0 0.0
  %877 = vmatpush1.msra.mxu0 0.0
  %878 = vmatprep.subr.mxu0 0.0
  %879 = vmatpush1.msra.mxu0 0.0
  %880 = vmatprep.subr.mxu0 0.0
  %881 = vmatpush1.msra.mxu0 0.0
  %882 = vmatprep.subr.mxu0 0.0
  %883 = vmatpush1.msra.mxu0 0.0
  %884 = vmatprep.subr.mxu0 0.0
  %885 = vmatpush1.msra.mxu0 0.0
  %886 = vmatprep.subr.mxu0 0.0
  %887 = vmatpush1.msra.mxu0 0.0
  %888 = vmatprep.subr.mxu0 0.0
  %889 = vmatpush1.msra.mxu0 0.0
  %890 = vmatprep.subr.mxu0 0.0
  %891 = vmatpush1.msra.mxu0 0.0
  %892 = vmatprep.subr.mxu0 0.0
  %893 = vmatpush1.msra.mxu0 0.0
  %894 = vmatprep.subr.mxu0 0.0
  %895 = vmatpush1.msra.mxu0 0.0
  %896 = vmatprep.subr.mxu0 0.0
  %897 = vmatpush1.msra.mxu0 0.0
  %898 = vmatprep.subr.mxu0 0.0
  %899 = vmatpush1.msra.mxu0 0.0
  %900 = vmatprep.subr.mxu0 0.0
  %901 = vmatpush1.msra.mxu0 0.0
  %902 = vmatprep.subr.mxu0 0.0
  %903 = vmatpush1.msra.mxu0 0.0
  %904 = vmatprep.mubr.f32.mxu0 0.0
  %905 = vmatmul.mubr.f32.gmra.mrb[0].mxu0 %v768
  %v906 = vpop.f32.mrb[0].mxu0
  %v907 = vadd.f32 0.0, %v906
  %v908 = vpop.f32.mrb[0].mxu0
  %909 = vdwg.mxu0
  %910 = vmatprep.subr.mxu0 0.0
  %911 = vmatpush1.msra.mxu0 %v40
  %912 = vmatprep.subr.mxu0 0.0
  %913 = vmatpush1.msra.mxu0 %v41
  %914 = vmatprep.subr.mxu0 0.0
  %915 = vmatpush1.msra.mxu0 %v42
  %916 = vmatprep.subr.mxu0 0.0
  %917 = vmatpush1.msra.mxu0 %v43
  %918 = vmatprep.subr.mxu0 0.0
  %919 = vmatpush1.msra.mxu0 0.0
  %920 = vmatprep.subr.mxu0 0.0
  %921 = vmatpush1.msra.mxu0 0.0
  %922 = vmatprep.subr.mxu0 0.0
  %923 = vmatpush1.msra.mxu0 0.0
  %924 = vmatprep.subr.mxu0 0.0
  %925 = vmatpush1.msra.mxu0 0.0
  %926 = vmatprep.subr.mxu0 0.0
  %927 = vmatpush1.msra.mxu0 0.0
  %928 = vmatprep.subr.mxu0 0.0
  %929 = vmatpush1.msra.mxu0 0.0
  %930 = vmatprep.subr.mxu0 0.0
  %931 = vmatpush1.msra.mxu0 0.0
  %932 = vmatprep.subr.mxu0 0.0
  %933 = vmatpush1.msra.mxu0 0.0
  %934 = vmatprep.subr.mxu0 0.0
  %935 = vmatpush1.msra.mxu0 0.0
  %936 = vmatprep.subr.mxu0 0.0
  %937 = vmatpush1.msra.mxu0 0.0
  %938 = vmatprep.subr.mxu0 0.0
  %939 = vmatpush1.msra.mxu0 0.0
  %940 = vmatprep.subr.mxu0 0.0
  %941 = vmatpush1.msra.mxu0 0.0
  %942 = vmatprep.subr.mxu0 0.0
  %943 = vmatpush1.msra.mxu0 0.0
  %944 = vmatprep.subr.mxu0 0.0
  %945 = vmatpush1.msra.mxu0 0.0
  %946 = vmatprep.subr.mxu0 0.0
  %947 = vmatpush1.msra.mxu0 0.0
  %948 = vmatprep.subr.mxu0 0.0
  %949 = vmatpush1.msra.mxu0 0.0
  %950 = vmatprep.subr.mxu0 0.0
  %951 = vmatpush1.msra.mxu0 0.0
  %952 = vmatprep.subr.mxu0 0.0
  %953 = vmatpush1.msra.mxu0 0.0
  %954 = vmatprep.subr.mxu0 0.0
  %955 = vmatpush1.msra.mxu0 0.0
  %956 = vmatprep.subr.mxu0 0.0
  %957 = vmatpush1.msra.mxu0 0.0
  %958 = vmatprep.subr.mxu0 0.0
  %959 = vmatpush1.msra.mxu0 0.0
  %960 = vmatprep.subr.mxu0 0.0
  %961 = vmatpush1.msra.mxu0 0.0
  %962 = vmatprep.subr.mxu0 0.0
  %963 = vmatpush1.msra.mxu0 0.0
  %964 = vmatprep.subr.mxu0 0.0
  %965 = vmatpush1.msra.mxu0 0.0
  %966 = vmatprep.subr.mxu0 0.0
  %967 = vmatpush1.msra.mxu0 0.0
  %968 = vmatprep.subr.mxu0 0.0
  %969 = vmatpush1.msra.mxu0 0.0
  %970 = vmatprep.subr.mxu0 0.0
  %971 = vmatpush1.msra.mxu0 0.0
  %972 = vmatprep.subr.mxu0 0.0
  %973 = vmatpush1.msra.mxu0 0.0
  %974 = vmatprep.mubr.f32.mxu0 0.0
  %975 = vmatmul.mubr.f32.gmra.mrb[0].mxu0 %v768
  %v976 = vpop.f32.mrb[0].mxu0
  %v977 = vadd.f32 %v193, %v976
  %v978 = vpop.f32.mrb[0].mxu0
  %979 = vdwg.mxu0
  %v980 = vld [vmem:[%s0 + $0x6] sm:$0x3]
  %v981 = vadd.f32 %v980, %v837
  %v982 = vxor.u32 %v981, 2147483648
  %v983 = vmul.f32 %v982, 1.442695
  %v984 = vpow.pop %v983
  %v985 = vadd.f32 %v984, 1.0
  %v986 = vrcp.pop %v985
  %v987 = vmul.f32 1.0, %v986
  %v988 = vld [vmem:[%s1 + $0x6] sm:$0x3]
  %v989 = vadd.f32 %v988, %v907
  %v990 = vxor.u32 %v989, 2147483648
  %v991 = vmul.f32 %v990, 1.442695
  %v992 = vpow.pop %v991
  %v993 = vadd.f32 %v992, 1.0
  %v994 = vrcp.pop %v993
  %v995 = vmul.f32 1.0, %v994
  %v996 = vld [vmem:[%s2 + $0x6] sm:$0x3]
  %v997 = vmul.f32 %v987, %v977
  %v998 = vadd.f32 %v996, %v997
  %v999 = vtanh.pop %v998
  %v1000 = vsub.f32 1.0, %v995
  %v1001 = vmul.f32 %v1000, %v999
  %v1002 = vmul.f32 %v995, %v765
  %v1003 = vadd.f32 %v1001, %v1002
  %1004 = vst.msk [vmem:[#allocation2 + $0x6] sm:$0x3] %vm289, %v1003
  %v1006 = vsel %vm45, %v1003, 0
  %1008 = vmatprep.subr.mxu0 0.0
  %1009 = vmatpush1.msra.mxu0 %v32
  %1010 = vmatprep.subr.mxu0 0.0
  %1011 = vmatpush1.msra.mxu0 %v33
  %1012 = vmatprep.subr.mxu0 0.0
  %1013 = vmatpush1.msra.mxu0 %v34
  %1014 = vmatprep.subr.mxu0 0.0
  %1015 = vmatpush1.msra.mxu0 %v35
  %1016 = vmatprep.subr.mxu0 0.0
  %1017 = vmatpush1.msra.mxu0 0.0
  %1018 = vmatprep.subr.mxu0 0.0
  %1019 = vmatpush1.msra.mxu0 0.0
  %1020 = vmatprep.subr.mxu0 0.0
  %1021 = vmatpush1.msra.mxu0 0.0
  %1022 = vmatprep.subr.mxu0 0.0
  %1023 = vmatpush1.msra.mxu0 0.0
  %1024 = vmatprep.subr.mxu0 0.0
  %1025 = vmatpush1.msra.mxu0 0.0
  %1026 = vmatprep.subr.mxu0 0.0
  %1027 = vmatpush1.msra.mxu0 0.0
  %1028 = vmatprep.subr.mxu0 0.0
  %1029 = vmatpush1.msra.mxu0 0.0
  %1030 = vmatprep.subr.mxu0 0.0
  %1031 = vmatpush1.msra.mxu0 0.0
  %1032 = vmatprep.subr.mxu0 0.0
  %1033 = vmatpush1.msra.mxu0 0.0
  %1034 = vmatprep.subr.mxu0 0.0
  %1035 = vmatpush1.msra.mxu0 0.0
  %1036 = vmatprep.subr.mxu0 0.0
  %1037 = vmatpush1.msra.mxu0 0.0
  %1038 = vmatprep.subr.mxu0 0.0
  %1039 = vmatpush1.msra.mxu0 0.0
  %1040 = vmatprep.subr.mxu0 0.0
  %1041 = vmatpush1.msra.mxu0 0.0
  %1042 = vmatprep.subr.mxu0 0.0
  %1043 = vmatpush1.msra.mxu0 0.0
  %1044 = vmatprep.subr.mxu0 0.0
  %1045 = vmatpush1.msra.mxu0 0.0
  %1046 = vmatprep.subr.mxu0 0.0
  %1047 = vmatpush1.msra.mxu0 0.0
  %1048 = vmatprep.subr.mxu0 0.0
  %1049 = vmatpush1.msra.mxu0 0.0
  %1050 = vmatprep.subr.mxu0 0.0
  %1051 = vmatpush1.msra.mxu0 0.0
  %1052 = vmatprep.subr.mxu0 0.0
  %1053 = vmatpush1.msra.mxu0 0.0
  %1054 = vmatprep.subr.mxu0 0.0
  %1055 = vmatpush1.msra.mxu0 0.0
  %1056 = vmatprep.subr.mxu0 0.0
  %1057 = vmatpush1.msra.mxu0 0.0
  %1058 = vmatprep.subr.mxu0 0.0
  %1059 = vmatpush1.msra.mxu0 0.0
  %1060 = vmatprep.subr.mxu0 0.0
  %1061 = vmatpush1.msra.mxu0 0.0
  %1062 = vmatprep.subr.mxu0 0.0
  %1063 = vmatpush1.msra.mxu0 0.0
  %1064 = vmatprep.subr.mxu0 0.0
  %1065 = vmatpush1.msra.mxu0 0.0
  %1066 = vmatprep.subr.mxu0 0.0
  %1067 = vmatpush1.msra.mxu0 0.0
  %1068 = vmatprep.subr.mxu0 0.0
  %1069 = vmatpush1.msra.mxu0 0.0
  %1070 = vmatprep.subr.mxu0 0.0
  %1071 = vmatpush1.msra.mxu0 0.0
  %1072 = vmatprep.mubr.f32.mxu0 0.0
  %1073 = vmatmul.mubr.f32.gmra.mrb[0].mxu0 %v1006
  %v1074 = vpop.f32.mrb[0].mxu0
  %v1075 = vadd.f32 0.0, %v1074
  %v1076 = vpop.f32.mrb[0].mxu0
  %1077 = vdwg.mxu0
  %1078 = vmatprep.subr.mxu0 0.0
  %1079 = vmatpush1.msra.mxu0 %v36
  %1080 = vmatprep.subr.mxu0 0.0
  %1081 = vmatpush1.msra.mxu0 %v37
  %1082 = vmatprep.subr.mxu0 0.0
  %1083 = vmatpush1.msra.mxu0 %v38
  %1084 = vmatprep.subr.mxu0 0.0
  %1085 = vmatpush1.msra.mxu0 %v39
  %1086 = vmatprep.subr.mxu0 0.0
  %1087 = vmatpush1.msra.mxu0 0.0
  %1088 = vmatprep.subr.mxu0 0.0
  %1089 = vmatpush1.msra.mxu0 0.0
  %1090 = vmatprep.subr.mxu0 0.0
  %1091 = vmatpush1.msra.mxu0 0.0
  %1092 = vmatprep.subr.mxu0 0.0
  %1093 = vmatpush1.msra.mxu0 0.0
  %1094 = vmatprep.subr.mxu0 0.0
  %1095 = vmatpush1.msra.mxu0 0.0
  %1096 = vmatprep.subr.mxu0 0.0
  %1097 = vmatpush1.msra.mxu0 0.0
  %1098 = vmatprep.subr.mxu0 0.0
  %1099 = vmatpush1.msra.mxu0 0.0
  %1100 = vmatprep.subr.mxu0 0.0
  %1101 = vmatpush1.msra.mxu0 0.0
  %1102 = vmatprep.subr.mxu0 0.0
  %1103 = vmatpush1.msra.mxu0 0.0
  %1104 = vmatprep.subr.mxu0 0.0
  %1105 = vmatpush1.msra.mxu0 0.0
  %1106 = vmatprep.subr.mxu0 0.0
  %1107 = vmatpush1.msra.mxu0 0.0
  %1108 = vmatprep.subr.mxu0 0.0
  %1109 = vmatpush1.msra.mxu0 0.0
  %1110 = vmatprep.subr.mxu0 0.0
  %1111 = vmatpush1.msra.mxu0 0.0
  %1112 = vmatprep.subr.mxu0 0.0
  %1113 = vmatpush1.msra.mxu0 0.0
  %1114 = vmatprep.subr.mxu0 0.0
  %1115 = vmatpush1.msra.mxu0 0.0
  %1116 = vmatprep.subr.mxu0 0.0
  %1117 = vmatpush1.msra.mxu0 0.0
  %1118 = vmatprep.subr.mxu0 0.0
  %1119 = vmatpush1.msra.mxu0 0.0
  %1120 = vmatprep.subr.mxu0 0.0
  %1121 = vmatpush1.msra.mxu0 0.0
  %1122 = vmatprep.subr.mxu0 0.0
  %1123 = vmatpush1.msra.mxu0 0.0
  %1124 = vmatprep.subr.mxu0 0.0
  %1125 = vmatpush1.msra.mxu0 0.0
  %1126 = vmatprep.subr.mxu0 0.0
  %1127 = vmatpush1.msra.mxu0 0.0
  %1128 = vmatprep.subr.mxu0 0.0
  %1129 = vmatpush1.msra.mxu0 0.0
  %1130 = vmatprep.subr.mxu0 0.0
  %1131 = vmatpush1.msra.mxu0 0.0
  %1132 = vmatprep.subr.mxu0 0.0
  %1133 = vmatpush1.msra.mxu0 0.0
  %1134 = vmatprep.subr.mxu0 0.0
  %1135 = vmatpush1.msra.mxu0 0.0
  %1136 = vmatprep.subr.mxu0 0.0
  %1137 = vmatpush1.msra.mxu0 0.0
  %1138 = vmatprep.subr.mxu0 0.0
  %1139 = vmatpush1.msra.mxu0 0.0
  %1140 = vmatprep.subr.mxu0 0.0
  %1141 = vmatpush1.msra.mxu0 0.0
  %1142 = vmatprep.mubr.f32.mxu0 0.0
  %1143 = vmatmul.mubr.f32.gmra.mrb[0].mxu0 %v1006
  %v1144 = vpop.f32.mrb[0].mxu0
  %v1145 = vadd.f32 0.0, %v1144
  %v1146 = vpop.f32.mrb[0].mxu0
  %1147 = vdwg.mxu0
  %1148 = vmatprep.subr.mxu0 0.0
  %1149 = vmatpush1.msra.mxu0 %v40
  %1150 = vmatprep.subr.mxu0 0.0
  %1151 = vmatpush1.msra.mxu0 %v41
  %1152 = vmatprep.subr.mxu0 0.0
  %1153 = vmatpush1.msra.mxu0 %v42
  %1154 = vmatprep.subr.mxu0 0.0
  %1155 = vmatpush1.msra.mxu0 %v43
  %1156 = vmatprep.subr.mxu0 0.0
  %1157 = vmatpush1.msra.mxu0 0.0
  %1158 = vmatprep.subr.mxu0 0.0
  %1159 = vmatpush1.msra.mxu0 0.0
  %1160 = vmatprep.subr.mxu0 0.0
  %1161 = vmatpush1.msra.mxu0 0.0
  %1162 = vmatprep.subr.mxu0 0.0
  %1163 = vmatpush1.msra.mxu0 0.0
  %1164 = vmatprep.subr.mxu0 0.0
  %1165 = vmatpush1.msra.mxu0 0.0
  %1166 = vmatprep.subr.mxu0 0.0
  %1167 = vmatpush1.msra.mxu0 0.0
  %1168 = vmatprep.subr.mxu0 0.0
  %1169 = vmatpush1.msra.mxu0 0.0
  %1170 = vmatprep.subr.mxu0 0.0
  %1171 = vmatpush1.msra.mxu0 0.0
  %1172 = vmatprep.subr.mxu0 0.0
  %1173 = vmatpush1.msra.mxu0 0.0
  %1174 = vmatprep.subr.mxu0 0.0
  %1175 = vmatpush1.msra.mxu0 0.0
  %1176 = vmatprep.subr.mxu0 0.0
  %1177 = vmatpush1.msra.mxu0 0.0
  %1178 = vmatprep.subr.mxu0 0.0
  %1179 = vmatpush1.msra.mxu0 0.0
  %1180 = vmatprep.subr.mxu0 0.0
  %1181 = vmatpush1.msra.mxu0 0.0
  %1182 = vmatprep.subr.mxu0 0.0
  %1183 = vmatpush1.msra.mxu0 0.0
  %1184 = vmatprep.subr.mxu0 0.0
  %1185 = vmatpush1.msra.mxu0 0.0
  %1186 = vmatprep.subr.mxu0 0.0
  %1187 = vmatpush1.msra.mxu0 0.0
  %1188 = vmatprep.subr.mxu0 0.0
  %1189 = vmatpush1.msra.mxu0 0.0
  %1190 = vmatprep.subr.mxu0 0.0
  %1191 = vmatpush1.msra.mxu0 0.0
  %1192 = vmatprep.subr.mxu0 0.0
  %1193 = vmatpush1.msra.mxu0 0.0
  %1194 = vmatprep.subr.mxu0 0.0
  %1195 = vmatpush1.msra.mxu0 0.0
  %1196 = vmatprep.subr.mxu0 0.0
  %1197 = vmatpush1.msra.mxu0 0.0
  %1198 = vmatprep.subr.mxu0 0.0
  %1199 = vmatpush1.msra.mxu0 0.0
  %1200 = vmatprep.subr.mxu0 0.0
  %1201 = vmatpush1.msra.mxu0 0.0
  %1202 = vmatprep.subr.mxu0 0.0
  %1203 = vmatpush1.msra.mxu0 0.0
  %1204 = vmatprep.subr.mxu0 0.0
  %1205 = vmatpush1.msra.mxu0 0.0
  %1206 = vmatprep.subr.mxu0 0.0
  %1207 = vmatpush1.msra.mxu0 0.0
  %1208 = vmatprep.subr.mxu0 0.0
  %1209 = vmatpush1.msra.mxu0 0.0
  %1210 = vmatprep.subr.mxu0 0.0
  %1211 = vmatpush1.msra.mxu0 0.0
  %1212 = vmatprep.mubr.f32.mxu0 0.0
  %1213 = vmatmul.mubr.f32.gmra.mrb[0].mxu0 %v1006
  %v1214 = vpop.f32.mrb[0].mxu0
  %v1215 = vadd.f32 %v193, %v1214
  %v1216 = vpop.f32.mrb[0].mxu0
  %1217 = vdwg.mxu0
  %v1218 = vld [vmem:[%s0 + $0x8] sm:$0x3]
  %v1219 = vadd.f32 %v1218, %v1075
  %v1220 = vxor.u32 %v1219, 2147483648
  %v1221 = vmul.f32 %v1220, 1.442695
  %v1222 = vpow.pop %v1221
  %v1223 = vadd.f32 %v1222, 1.0
  %v1224 = vrcp.pop %v1223
  %v1225 = vmul.f32 1.0, %v1224
  %v1226 = vld [vmem:[%s1 + $0x8] sm:$0x3]
  %v1227 = vadd.f32 %v1226, %v1145
  %v1228 = vxor.u32 %v1227, 2147483648
  %v1229 = vmul.f32 %v1228, 1.442695
  %v1230 = vpow.pop %v1229
  %v1231 = vadd.f32 %v1230, 1.0
  %v1232 = vrcp.pop %v1231
  %v1233 = vmul.f32 1.0, %v1232
  %v1234 = vld [vmem:[%s2 + $0x8] sm:$0x3]
  %v1235 = vmul.f32 %v1225, %v1215
  %v1236 = vadd.f32 %v1234, %v1235
  %v1237 = vtanh.pop %v1236
  %v1238 = vsub.f32 1.0, %v1233
  %v1239 = vmul.f32 %v1238, %v1237
  %v1240 = vmul.f32 %v1233, %v1003
  %v1241 = vadd.f32 %v1239, %v1240
  %1242 = vst.msk [vmem:[#allocation2 + $0x8] sm:$0x3] %vm289, %v1241
  %v1244 = vsel %vm45, %v1241, 0
  %1246 = vmatprep.subr.mxu0 0.0
  %1247 = vmatpush1.msra.mxu0 %v32
  %1248 = vmatprep.subr.mxu0 0.0
  %1249 = vmatpush1.msra.mxu0 %v33
  %1250 = vmatprep.subr.mxu0 0.0
  %1251 = vmatpush1.msra.mxu0 %v34
  %1252 = vmatprep.subr.mxu0 0.0
  %1253 = vmatpush1.msra.mxu0 %v35
  %1254 = vmatprep.subr.mxu0 0.0
  %1255 = vmatpush1.msra.mxu0 0.0
  %1256 = vmatprep.subr.mxu0 0.0
  %1257 = vmatpush1.msra.mxu0 0.0
  %1258 = vmatprep.subr.mxu0 0.0
  %1259 = vmatpush1.msra.mxu0 0.0
  %1260 = vmatprep.subr.mxu0 0.0
  %1261 = vmatpush1.msra.mxu0 0.0
  %1262 = vmatprep.subr.mxu0 0.0
  %1263 = vmatpush1.msra.mxu0 0.0
  %1264 = vmatprep.subr.mxu0 0.0
  %1265 = vmatpush1.msra.mxu0 0.0
  %1266 = vmatprep.subr.mxu0 0.0
  %1267 = vmatpush1.msra.mxu0 0.0
  %1268 = vmatprep.subr.mxu0 0.0
  %1269 = vmatpush1.msra.mxu0 0.0
  %1270 = vmatprep.subr.mxu0 0.0
  %1271 = vmatpush1.msra.mxu0 0.0
  %1272 = vmatprep.subr.mxu0 0.0
  %1273 = vmatpush1.msra.mxu0 0.0
  %1274 = vmatprep.subr.mxu0 0.0
  %1275 = vmatpush1.msra.mxu0 0.0
  %1276 = vmatprep.subr.mxu0 0.0
  %1277 = vmatpush1.msra.mxu0 0.0
  %1278 = vmatprep.subr.mxu0 0.0
  %1279 = vmatpush1.msra.mxu0 0.0
  %1280 = vmatprep.subr.mxu0 0.0
  %1281 = vmatpush1.msra.mxu0 0.0
  %1282 = vmatprep.subr.mxu0 0.0
  %1283 = vmatpush1.msra.mxu0 0.0
  %1284 = vmatprep.subr.mxu0 0.0
  %1285 = vmatpush1.msra.mxu0 0.0
  %1286 = vmatprep.subr.mxu0 0.0
  %1287 = vmatpush1.msra.mxu0 0.0
  %1288 = vmatprep.subr.mxu0 0.0
  %1289 = vmatpush1.msra.mxu0 0.0
  %1290 = vmatprep.subr.mxu0 0.0
  %1291 = vmatpush1.msra.mxu0 0.0
  %1292 = vmatprep.subr.mxu0 0.0
  %1293 = vmatpush1.msra.mxu0 0.0
  %1294 = vmatprep.subr.mxu0 0.0
  %1295 = vmatpush1.msra.mxu0 0.0
  %1296 = vmatprep.subr.mxu0 0.0
  %1297 = vmatpush1.msra.mxu0 0.0
  %1298 = vmatprep.subr.mxu0 0.0
  %1299 = vmatpush1.msra.mxu0 0.0
  %1300 = vmatprep.subr.mxu0 0.0
  %1301 = vmatpush1.msra.mxu0 0.0
  %1302 = vmatprep.subr.mxu0 0.0
  %1303 = vmatpush1.msra.mxu0 0.0
  %1304 = vmatprep.subr.mxu0 0.0
  %1305 = vmatpush1.msra.mxu0 0.0
  %1306 = vmatprep.subr.mxu0 0.0
  %1307 = vmatpush1.msra.mxu0 0.0
  %1308 = vmatprep.subr.mxu0 0.0
  %1309 = vmatpush1.msra.mxu0 0.0
  %1310 = vmatprep.mubr.f32.mxu0 0.0
  %1311 = vmatmul.mubr.f32.gmra.mrb[0].mxu0 %v1244
  %v1312 = vpop.f32.mrb[0].mxu0
  %v1313 = vadd.f32 0.0, %v1312
  %v1314 = vpop.f32.mrb[0].mxu0
  %1315 = vdwg.mxu0
  %1316 = vmatprep.subr.mxu0 0.0
  %1317 = vmatpush1.msra.mxu0 %v36
  %1318 = vmatprep.subr.mxu0 0.0
  %1319 = vmatpush1.msra.mxu0 %v37
  %1320 = vmatprep.subr.mxu0 0.0
  %1321 = vmatpush1.msra.mxu0 %v38
  %1322 = vmatprep.subr.mxu0 0.0
  %1323 = vmatpush1.msra.mxu0 %v39
  %1324 = vmatprep.subr.mxu0 0.0
  %1325 = vmatpush1.msra.mxu0 0.0
  %1326 = vmatprep.subr.mxu0 0.0
  %1327 = vmatpush1.msra.mxu0 0.0
  %1328 = vmatprep.subr.mxu0 0.0
  %1329 = vmatpush1.msra.mxu0 0.0
  %1330 = vmatprep.subr.mxu0 0.0
  %1331 = vmatpush1.msra.mxu0 0.0
  %1332 = vmatprep.subr.mxu0 0.0
  %1333 = vmatpush1.msra.mxu0 0.0
  %1334 = vmatprep.subr.mxu0 0.0
  %1335 = vmatpush1.msra.mxu0 0.0
  %1336 = vmatprep.subr.mxu0 0.0
  %1337 = vmatpush1.msra.mxu0 0.0
  %1338 = vmatprep.subr.mxu0 0.0
  %1339 = vmatpush1.msra.mxu0 0.0
  %1340 = vmatprep.subr.mxu0 0.0
  %1341 = vmatpush1.msra.mxu0 0.0
  %1342 = vmatprep.subr.mxu0 0.0
  %1343 = vmatpush1.msra.mxu0 0.0
  %1344 = vmatprep.subr.mxu0 0.0
  %1345 = vmatpush1.msra.mxu0 0.0
  %1346 = vmatprep.subr.mxu0 0.0
  %1347 = vmatpush1.msra.mxu0 0.0
  %1348 = vmatprep.subr.mxu0 0.0
  %1349 = vmatpush1.msra.mxu0 0.0
  %1350 = vmatprep.subr.mxu0 0.0
  %1351 = vmatpush1.msra.mxu0 0.0
  %1352 = vmatprep.subr.mxu0 0.0
  %1353 = vmatpush1.msra.mxu0 0.0
  %1354 = vmatprep.subr.mxu0 0.0
  %1355 = vmatpush1.msra.mxu0 0.0
  %1356 = vmatprep.subr.mxu0 0.0
  %1357 = vmatpush1.msra.mxu0 0.0
  %1358 = vmatprep.subr.mxu0 0.0
  %1359 = vmatpush1.msra.mxu0 0.0
  %1360 = vmatprep.subr.mxu0 0.0
  %1361 = vmatpush1.msra.mxu0 0.0
  %1362 = vmatprep.subr.mxu0 0.0
  %1363 = vmatpush1.msra.mxu0 0.0
  %1364 = vmatprep.subr.mxu0 0.0
  %1365 = vmatpush1.msra.mxu0 0.0
  %1366 = vmatprep.subr.mxu0 0.0
  %1367 = vmatpush1.msra.mxu0 0.0
  %1368 = vmatprep.subr.mxu0 0.0
  %1369 = vmatpush1.msra.mxu0 0.0
  %1370 = vmatprep.subr.mxu0 0.0
  %1371 = vmatpush1.msra.mxu0 0.0
  %1372 = vmatprep.subr.mxu0 0.0
  %1373 = vmatpush1.msra.mxu0 0.0
  %1374 = vmatprep.subr.mxu0 0.0
  %1375 = vmatpush1.msra.mxu0 0.0
  %1376 = vmatprep.subr.mxu0 0.0
  %1377 = vmatpush1.msra.mxu0 0.0
  %1378 = vmatprep.subr.mxu0 0.0
  %1379 = vmatpush1.msra.mxu0 0.0
  %1380 = vmatprep.mubr.f32.mxu0 0.0
  %1381 = vmatmul.mubr.f32.gmra.mrb[0].mxu0 %v1244
  %v1382 = vpop.f32.mrb[0].mxu0
  %v1383 = vadd.f32 0.0, %v1382
  %v1384 = vpop.f32.mrb[0].mxu0
  %1385 = vdwg.mxu0
  %1386 = vmatprep.subr.mxu0 0.0
  %1387 = vmatpush1.msra.mxu0 %v40
  %1388 = vmatprep.subr.mxu0 0.0
  %1389 = vmatpush1.msra.mxu0 %v41
  %1390 = vmatprep.subr.mxu0 0.0
  %1391 = vmatpush1.msra.mxu0 %v42
  %1392 = vmatprep.subr.mxu0 0.0
  %1393 = vmatpush1.msra.mxu0 %v43
  %1394 = vmatprep.subr.mxu0 0.0
  %1395 = vmatpush1.msra.mxu0 0.0
  %1396 = vmatprep.subr.mxu0 0.0
  %1397 = vmatpush1.msra.mxu0 0.0
  %1398 = vmatprep.subr.mxu0 0.0
  %1399 = vmatpush1.msra.mxu0 0.0
  %1400 = vmatprep.subr.mxu0 0.0
  %1401 = vmatpush1.msra.mxu0 0.0
  %1402 = vmatprep.subr.mxu0 0.0
  %1403 = vmatpush1.msra.mxu0 0.0
  %1404 = vmatprep.subr.mxu0 0.0
  %1405 = vmatpush1.msra.mxu0 0.0
  %1406 = vmatprep.subr.mxu0 0.0
  %1407 = vmatpush1.msra.mxu0 0.0
  %1408 = vmatprep.subr.mxu0 0.0
  %1409 = vmatpush1.msra.mxu0 0.0
  %1410 = vmatprep.subr.mxu0 0.0
  %1411 = vmatpush1.msra.mxu0 0.0
  %1412 = vmatprep.subr.mxu0 0.0
  %1413 = vmatpush1.msra.mxu0 0.0
  %1414 = vmatprep.subr.mxu0 0.0
  %1415 = vmatpush1.msra.mxu0 0.0
  %1416 = vmatprep.subr.mxu0 0.0
  %1417 = vmatpush1.msra.mxu0 0.0
  %1418 = vmatprep.subr.mxu0 0.0
  %1419 = vmatpush1.msra.mxu0 0.0
  %1420 = vmatprep.subr.mxu0 0.0
  %1421 = vmatpush1.msra.mxu0 0.0
  %1422 = vmatprep.subr.mxu0 0.0
  %1423 = vmatpush1.msra.mxu0 0.0
  %1424 = vmatprep.subr.mxu0 0.0
  %1425 = vmatpush1.msra.mxu0 0.0
  %1426 = vmatprep.subr.mxu0 0.0
  %1427 = vmatpush1.msra.mxu0 0.0
  %1428 = vmatprep.subr.mxu0 0.0
  %1429 = vmatpush1.msra.mxu0 0.0
  %1430 = vmatprep.subr.mxu0 0.0
  %1431 = vmatpush1.msra.mxu0 0.0
  %1432 = vmatprep.subr.mxu0 0.0
  %1433 = vmatpush1.msra.mxu0 0.0
  %1434 = vmatprep.subr.mxu0 0.0
  %1435 = vmatpush1.msra.mxu0 0.0
  %1436 = vmatprep.subr.mxu0 0.0
  %1437 = vmatpush1.msra.mxu0 0.0
  %1438 = vmatprep.subr.mxu0 0.0
  %1439 = vmatpush1.msra.mxu0 0.0
  %1440 = vmatprep.subr.mxu0 0.0
  %1441 = vmatpush1.msra.mxu0 0.0
  %1442 = vmatprep.subr.mxu0 0.0
  %1443 = vmatpush1.msra.mxu0 0.0
  %1444 = vmatprep.subr.mxu0 0.0
  %1445 = vmatpush1.msra.mxu0 0.0
  %1446 = vmatprep.subr.mxu0 0.0
  %1447 = vmatpush1.msra.mxu0 0.0
  %1448 = vmatprep.subr.mxu0 0.0
  %1449 = vmatpush1.msra.mxu0 0.0
  %1450 = vmatprep.mubr.f32.mxu0 0.0
  %1451 = vmatmul.mubr.f32.gmra.mrb[0].mxu0 %v1244
  %v1452 = vpop.f32.mrb[0].mxu0
  %v1453 = vadd.f32 %v193, %v1452
  %v1454 = vpop.f32.mrb[0].mxu0
  %1455 = vdwg.mxu0
  %v1456 = vld [vmem:[%s0 + $0xa] sm:$0x3]
  %v1457 = vadd.f32 %v1456, %v1313
  %v1458 = vxor.u32 %v1457, 2147483648
  %v1459 = vmul.f32 %v1458, 1.442695
  %v1460 = vpow.pop %v1459
  %v1461 = vadd.f32 %v1460, 1.0
  %v1462 = vrcp.pop %v1461
  %v1463 = vmul.f32 1.0, %v1462
  %v1464 = vld [vmem:[%s1 + $0xa] sm:$0x3]
  %v1465 = vadd.f32 %v1464, %v1383
  %v1466 = vxor.u32 %v1465, 2147483648
  %v1467 = vmul.f32 %v1466, 1.442695
  %v1468 = vpow.pop %v1467
  %v1469 = vadd.f32 %v1468, 1.0
  %v1470 = vrcp.pop %v1469
  %v1471 = vmul.f32 1.0, %v1470
  %v1472 = vld [vmem:[%s2 + $0xa] sm:$0x3]
  %v1473 = vmul.f32 %v1463, %v1453
  %v1474 = vadd.f32 %v1472, %v1473
  %v1475 = vtanh.pop %v1474
  %v1476 = vsub.f32 1.0, %v1471
  %v1477 = vmul.f32 %v1476, %v1475
  %v1478 = vmul.f32 %v1471, %v1241
  %v1479 = vadd.f32 %v1477, %v1478
  %1480 = vst.msk [vmem:[#allocation2 + $0xa] sm:$0x3] %vm289, %v1479
  %v1482 = vsel %vm45, %v1479, 0
  %1484 = vmatprep.subr.mxu0 0.0
  %1485 = vmatpush1.msra.mxu0 %v32
  %1486 = vmatprep.subr.mxu0 0.0
  %1487 = vmatpush1.msra.mxu0 %v33
  %1488 = vmatprep.subr.mxu0 0.0
  %1489 = vmatpush1.msra.mxu0 %v34
  %1490 = vmatprep.subr.mxu0 0.0
  %1491 = vmatpush1.msra.mxu0 %v35
  %1492 = vmatprep.subr.mxu0 0.0
  %1493 = vmatpush1.msra.mxu0 0.0
  %1494 = vmatprep.subr.mxu0 0.0
  %1495 = vmatpush1.msra.mxu0 0.0
  %1496 = vmatprep.subr.mxu0 0.0
  %1497 = vmatpush1.msra.mxu0 0.0
  %1498 = vmatprep.subr.mxu0 0.0
  %1499 = vmatpush1.msra.mxu0 0.0
  %1500 = vmatprep.subr.mxu0 0.0
  %1501 = vmatpush1.msra.mxu0 0.0
  %1502 = vmatprep.subr.mxu0 0.0
  %1503 = vmatpush1.msra.mxu0 0.0
  %1504 = vmatprep.subr.mxu0 0.0
  %1505 = vmatpush1.msra.mxu0 0.0
  %1506 = vmatprep.subr.mxu0 0.0
  %1507 = vmatpush1.msra.mxu0 0.0
  %1508 = vmatprep.subr.mxu0 0.0
  %1509 = vmatpush1.msra.mxu0 0.0
  %1510 = vmatprep.subr.mxu0 0.0
  %1511 = vmatpush1.msra.mxu0 0.0
  %1512 = vmatprep.subr.mxu0 0.0
  %1513 = vmatpush1.msra.mxu0 0.0
  %1514 = vmatprep.subr.mxu0 0.0
  %1515 = vmatpush1.msra.mxu0 0.0
  %1516 = vmatprep.subr.mxu0 0.0
  %1517 = vmatpush1.msra.mxu0 0.0
  %1518 = vmatprep.subr.mxu0 0.0
  %1519 = vmatpush1.msra.mxu0 0.0
  %1520 = vmatprep.subr.mxu0 0.0
  %1521 = vmatpush1.msra.mxu0 0.0
  %1522 = vmatprep.subr.mxu0 0.0
  %1523 = vmatpush1.msra.mxu0 0.0
  %1524 = vmatprep.subr.mxu0 0.0
  %1525 = vmatpush1.msra.mxu0 0.0
  %1526 = vmatprep.subr.mxu0 0.0
  %1527 = vmatpush1.msra.mxu0 0.0
  %1528 = vmatprep.subr.mxu0 0.0
  %1529 = vmatpush1.msra.mxu0 0.0
  %1530 = vmatprep.subr.mxu0 0.0
  %1531 = vmatpush1.msra.mxu0 0.0
  %1532 = vmatprep.subr.mxu0 0.0
  %1533 = vmatpush1.msra.mxu0 0.0
  %1534 = vmatprep.subr.mxu0 0.0
  %1535 = vmatpush1.msra.mxu0 0.0
  %1536 = vmatprep.subr.mxu0 0.0
  %1537 = vmatpush1.msra.mxu0 0.0
  %1538 = vmatprep.subr.mxu0 0.0
  %1539 = vmatpush1.msra.mxu0 0.0
  %1540 = vmatprep.subr.mxu0 0.0
  %1541 = vmatpush1.msra.mxu0 0.0
  %1542 = vmatprep.subr.mxu0 0.0
  %1543 = vmatpush1.msra.mxu0 0.0
  %1544 = vmatprep.subr.mxu0 0.0
  %1545 = vmatpush1.msra.mxu0 0.0
  %1546 = vmatprep.subr.mxu0 0.0
  %1547 = vmatpush1.msra.mxu0 0.0
  %1548 = vmatprep.mubr.f32.mxu0 0.0
  %1549 = vmatmul.mubr.f32.gmra.mrb[0].mxu0 %v1482
  %v1550 = vpop.f32.mrb[0].mxu0
  %v1551 = vadd.f32 0.0, %v1550
  %v1552 = vpop.f32.mrb[0].mxu0
  %1553 = vdwg.mxu0
  %1554 = vmatprep.subr.mxu0 0.0
  %1555 = vmatpush1.msra.mxu0 %v36
  %1556 = vmatprep.subr.mxu0 0.0
  %1557 = vmatpush1.msra.mxu0 %v37
  %1558 = vmatprep.subr.mxu0 0.0
  %1559 = vmatpush1.msra.mxu0 %v38
  %1560 = vmatprep.subr.mxu0 0.0
  %1561 = vmatpush1.msra.mxu0 %v39
  %1562 = vmatprep.subr.mxu0 0.0
  %1563 = vmatpush1.msra.mxu0 0.0
  %1564 = vmatprep.subr.mxu0 0.0
  %1565 = vmatpush1.msra.mxu0 0.0
  %1566 = vmatprep.subr.mxu0 0.0
  %1567 = vmatpush1.msra.mxu0 0.0
  %1568 = vmatprep.subr.mxu0 0.0
  %1569 = vmatpush1.msra.mxu0 0.0
  %1570 = vmatprep.subr.mxu0 0.0
  %1571 = vmatpush1.msra.mxu0 0.0
  %1572 = vmatprep.subr.mxu0 0.0
  %1573 = vmatpush1.msra.mxu0 0.0
  %1574 = vmatprep.subr.mxu0 0.0
  %1575 = vmatpush1.msra.mxu0 0.0
  %1576 = vmatprep.subr.mxu0 0.0
  %1577 = vmatpush1.msra.mxu0 0.0
  %1578 = vmatprep.subr.mxu0 0.0
  %1579 = vmatpush1.msra.mxu0 0.0
  %1580 = vmatprep.subr.mxu0 0.0
  %1581 = vmatpush1.msra.mxu0 0.0
  %1582 = vmatprep.subr.mxu0 0.0
  %1583 = vmatpush1.msra.mxu0 0.0
  %1584 = vmatprep.subr.mxu0 0.0
  %1585 = vmatpush1.msra.mxu0 0.0
  %1586 = vmatprep.subr.mxu0 0.0
  %1587 = vmatpush1.msra.mxu0 0.0
  %1588 = vmatprep.subr.mxu0 0.0
  %1589 = vmatpush1.msra.mxu0 0.0
  %1590 = vmatprep.subr.mxu0 0.0
  %1591 = vmatpush1.msra.mxu0 0.0
  %1592 = vmatprep.subr.mxu0 0.0
  %1593 = vmatpush1.msra.mxu0 0.0
  %1594 = vmatprep.subr.mxu0 0.0
  %1595 = vmatpush1.msra.mxu0 0.0
  %1596 = vmatprep.subr.mxu0 0.0
  %1597 = vmatpush1.msra.mxu0 0.0
  %1598 = vmatprep.subr.mxu0 0.0
  %1599 = vmatpush1.msra.mxu0 0.0
  %1600 = vmatprep.subr.mxu0 0.0
  %1601 = vmatpush1.msra.mxu0 0.0
  %1602 = vmatprep.subr.mxu0 0.0
  %1603 = vmatpush1.msra.mxu0 0.0
  %1604 = vmatprep.subr.mxu0 0.0
  %1605 = vmatpush1.msra.mxu0 0.0
  %1606 = vmatprep.subr.mxu0 0.0
  %1607 = vmatpush1.msra.mxu0 0.0
  %1608 = vmatprep.subr.mxu0 0.0
  %1609 = vmatpush1.msra.mxu0 0.0
  %1610 = vmatprep.subr.mxu0 0.0
  %1611 = vmatpush1.msra.mxu0 0.0
  %1612 = vmatprep.subr.mxu0 0.0
  %1613 = vmatpush1.msra.mxu0 0.0
  %1614 = vmatprep.subr.mxu0 0.0
  %1615 = vmatpush1.msra.mxu0 0.0
  %1616 = vmatprep.subr.mxu0 0.0
  %1617 = vmatpush1.msra.mxu0 0.0
  %1618 = vmatprep.mubr.f32.mxu0 0.0
  %1619 = vmatmul.mubr.f32.gmra.mrb[0].mxu0 %v1482
  %v1620 = vpop.f32.mrb[0].mxu0
  %v1621 = vadd.f32 0.0, %v1620
  %v1622 = vpop.f32.mrb[0].mxu0
  %1623 = vdwg.mxu0
  %1624 = vmatprep.subr.mxu0 0.0
  %1625 = vmatpush1.msra.mxu0 %v40
  %1626 = vmatprep.subr.mxu0 0.0
  %1627 = vmatpush1.msra.mxu0 %v41
  %1628 = vmatprep.subr.mxu0 0.0
  %1629 = vmatpush1.msra.mxu0 %v42
  %1630 = vmatprep.subr.mxu0 0.0
  %1631 = vmatpush1.msra.mxu0 %v43
  %1632 = vmatprep.subr.mxu0 0.0
  %1633 = vmatpush1.msra.mxu0 0.0
  %1634 = vmatprep.subr.mxu0 0.0
  %1635 = vmatpush1.msra.mxu0 0.0
  %1636 = vmatprep.subr.mxu0 0.0
  %1637 = vmatpush1.msra.mxu0 0.0
  %1638 = vmatprep.subr.mxu0 0.0
  %1639 = vmatpush1.msra.mxu0 0.0
  %1640 = vmatprep.subr.mxu0 0.0
  %1641 = vmatpush1.msra.mxu0 0.0
  %1642 = vmatprep.subr.mxu0 0.0
  %1643 = vmatpush1.msra.mxu0 0.0
  %1644 = vmatprep.subr.mxu0 0.0
  %1645 = vmatpush1.msra.mxu0 0.0
  %1646 = vmatprep.subr.mxu0 0.0
  %1647 = vmatpush1.msra.mxu0 0.0
  %1648 = vmatprep.subr.mxu0 0.0
  %1649 = vmatpush1.msra.mxu0 0.0
  %1650 = vmatprep.subr.mxu0 0.0
  %1651 = vmatpush1.msra.mxu0 0.0
  %1652 = vmatprep.subr.mxu0 0.0
  %1653 = vmatpush1.msra.mxu0 0.0
  %1654 = vmatprep.subr.mxu0 0.0
  %1655 = vmatpush1.msra.mxu0 0.0
  %1656 = vmatprep.subr.mxu0 0.0
  %1657 = vmatpush1.msra.mxu0 0.0
  %1658 = vmatprep.subr.mxu0 0.0
  %1659 = vmatpush1.msra.mxu0 0.0
  %1660 = vmatprep.subr.mxu0 0.0
  %1661 = vmatpush1.msra.mxu0 0.0
  %1662 = vmatprep.subr.mxu0 0.0
  %1663 = vmatpush1.msra.mxu0 0.0
  %1664 = vmatprep.subr.mxu0 0.0
  %1665 = vmatpush1.msra.mxu0 0.0
  %1666 = vmatprep.subr.mxu0 0.0
  %1667 = vmatpush1.msra.mxu0 0.0
  %1668 = vmatprep.subr.mxu0 0.0
  %1669 = vmatpush1.msra.mxu0 0.0
  %1670 = vmatprep.subr.mxu0 0.0
  %1671 = vmatpush1.msra.mxu0 0.0
  %1672 = vmatprep.subr.mxu0 0.0
  %1673 = vmatpush1.msra.mxu0 0.0
  %1674 = vmatprep.subr.mxu0 0.0
  %1675 = vmatpush1.msra.mxu0 0.0
  %1676 = vmatprep.subr.mxu0 0.0
  %1677 = vmatpush1.msra.mxu0 0.0
  %1678 = vmatprep.subr.mxu0 0.0
  %1679 = vmatpush1.msra.mxu0 0.0
  %1680 = vmatprep.subr.mxu0 0.0
  %1681 = vmatpush1.msra.mxu0 0.0
  %1682 = vmatprep.subr.mxu0 0.0
  %1683 = vmatpush1.msra.mxu0 0.0
  %1684 = vmatprep.subr.mxu0 0.0
  %1685 = vmatpush1.msra.mxu0 0.0
  %1686 = vmatprep.subr.mxu0 0.0
  %1687 = vmatpush1.msra.mxu0 0.0
  %1688 = vmatprep.mubr.f32.mxu0 0.0
  %1689 = vmatmul.mubr.f32.gmra.mrb[0].mxu0 %v1482
  %v1690 = vpop.f32.mrb[0].mxu0
  %v1691 = vadd.f32 %v193, %v1690
  %v1692 = vpop.f32.mrb[0].mxu0
  %1693 = vdwg.mxu0
  %v1694 = vld [vmem:[%s0 + $0xc] sm:$0x3]
  %v1695 = vadd.f32 %v1694, %v1551
  %v1696 = vxor.u32 %v1695, 2147483648
  %v1697 = vmul.f32 %v1696, 1.442695
  %v1698 = vpow.pop %v1697
  %v1699 = vadd.f32 %v1698, 1.0
  %v1700 = vrcp.pop %v1699
  %v1701 = vmul.f32 1.0, %v1700
  %v1702 = vld [vmem:[%s1 + $0xc] sm:$0x3]
  %v1703 = vadd.f32 %v1702, %v1621
  %v1704 = vxor.u32 %v1703, 2147483648
  %v1705 = vmul.f32 %v1704, 1.442695
  %v1706 = vpow.pop %v1705
  %v1707 = vadd.f32 %v1706, 1.0
  %v1708 = vrcp.pop %v1707
  %v1709 = vmul.f32 1.0, %v1708
  %v1710 = vld [vmem:[%s2 + $0xc] sm:$0x3]
  %v1711 = vmul.f32 %v1701, %v1691
  %v1712 = vadd.f32 %v1710, %v1711
  %v1713 = vtanh.pop %v1712
  %v1714 = vsub.f32 1.0, %v1709
  %v1715 = vmul.f32 %v1714, %v1713
  %v1716 = vmul.f32 %v1709, %v1479
  %v1717 = vadd.f32 %v1715, %v1716
  %1718 = vst.msk [vmem:[#allocation2 + $0xc] sm:$0x3] %vm289, %v1717
  %v1720 = vsel %vm45, %v1717, 0
  %1722 = vmatprep.subr.mxu0 0.0
  %1723 = vmatpush1.msra.mxu0 %v32
  %1724 = vmatprep.subr.mxu0 0.0
  %1725 = vmatpush1.msra.mxu0 %v33
  %1726 = vmatprep.subr.mxu0 0.0
  %1727 = vmatpush1.msra.mxu0 %v34
  %1728 = vmatprep.subr.mxu0 0.0
  %1729 = vmatpush1.msra.mxu0 %v35
  %1730 = vmatprep.subr.mxu0 0.0
  %1731 = vmatpush1.msra.mxu0 0.0
  %1732 = vmatprep.subr.mxu0 0.0
  %1733 = vmatpush1.msra.mxu0 0.0
  %1734 = vmatprep.subr.mxu0 0.0
  %1735 = vmatpush1.msra.mxu0 0.0
  %1736 = vmatprep.subr.mxu0 0.0
  %1737 = vmatpush1.msra.mxu0 0.0
  %1738 = vmatprep.subr.mxu0 0.0
  %1739 = vmatpush1.msra.mxu0 0.0
  %1740 = vmatprep.subr.mxu0 0.0
  %1741 = vmatpush1.msra.mxu0 0.0
  %1742 = vmatprep.subr.mxu0 0.0
  %1743 = vmatpush1.msra.mxu0 0.0
  %1744 = vmatprep.subr.mxu0 0.0
  %1745 = vmatpush1.msra.mxu0 0.0
  %1746 = vmatprep.subr.mxu0 0.0
  %1747 = vmatpush1.msra.mxu0 0.0
  %1748 = vmatprep.subr.mxu0 0.0
  %1749 = vmatpush1.msra.mxu0 0.0
  %1750 = vmatprep.subr.mxu0 0.0
  %1751 = vmatpush1.msra.mxu0 0.0
  %1752 = vmatprep.subr.mxu0 0.0
  %1753 = vmatpush1.msra.mxu0 0.0
  %1754 = vmatprep.subr.mxu0 0.0
  %1755 = vmatpush1.msra.mxu0 0.0
  %1756 = vmatprep.subr.mxu0 0.0
  %1757 = vmatpush1.msra.mxu0 0.0
  %1758 = vmatprep.subr.mxu0 0.0
  %1759 = vmatpush1.msra.mxu0 0.0
  %1760 = vmatprep.subr.mxu0 0.0
  %1761 = vmatpush1.msra.mxu0 0.0
  %1762 = vmatprep.subr.mxu0 0.0
  %1763 = vmatpush1.msra.mxu0 0.0
  %1764 = vmatprep.subr.mxu0 0.0
  %1765 = vmatpush1.msra.mxu0 0.0
  %1766 = vmatprep.subr.mxu0 0.0
  %1767 = vmatpush1.msra.mxu0 0.0
  %1768 = vmatprep.subr.mxu0 0.0
  %1769 = vmatpush1.msra.mxu0 0.0
  %1770 = vmatprep.subr.mxu0 0.0
  %1771 = vmatpush1.msra.mxu0 0.0
  %1772 = vmatprep.subr.mxu0 0.0
  %1773 = vmatpush1.msra.mxu0 0.0
  %1774 = vmatprep.subr.mxu0 0.0
  %1775 = vmatpush1.msra.mxu0 0.0
  %1776 = vmatprep.subr.mxu0 0.0
  %1777 = vmatpush1.msra.mxu0 0.0
  %1778 = vmatprep.subr.mxu0 0.0
  %1779 = vmatpush1.msra.mxu0 0.0
  %1780 = vmatprep.subr.mxu0 0.0
  %1781 = vmatpush1.msra.mxu0 0.0
  %1782 = vmatprep.subr.mxu0 0.0
  %1783 = vmatpush1.msra.mxu0 0.0
  %1784 = vmatprep.subr.mxu0 0.0
  %1785 = vmatpush1.msra.mxu0 0.0
  %1786 = vmatprep.mubr.f32.mxu0 0.0
  %1787 = vmatmul.mubr.f32.gmra.mrb[0].mxu0 %v1720
  %v1788 = vpop.f32.mrb[0].mxu0
  %v1789 = vadd.f32 0.0, %v1788
  %v1790 = vpop.f32.mrb[0].mxu0
  %1791 = vdwg.mxu0
  %1792 = vmatprep.subr.mxu0 0.0
  %1793 = vmatpush1.msra.mxu0 %v36
  %1794 = vmatprep.subr.mxu0 0.0
  %1795 = vmatpush1.msra.mxu0 %v37
  %1796 = vmatprep.subr.mxu0 0.0
  %1797 = vmatpush1.msra.mxu0 %v38
  %1798 = vmatprep.subr.mxu0 0.0
  %1799 = vmatpush1.msra.mxu0 %v39
  %1800 = vmatprep.subr.mxu0 0.0
  %1801 = vmatpush1.msra.mxu0 0.0
  %1802 = vmatprep.subr.mxu0 0.0
  %1803 = vmatpush1.msra.mxu0 0.0
  %1804 = vmatprep.subr.mxu0 0.0
  %1805 = vmatpush1.msra.mxu0 0.0
  %1806 = vmatprep.subr.mxu0 0.0
  %1807 = vmatpush1.msra.mxu0 0.0
  %1808 = vmatprep.subr.mxu0 0.0
  %1809 = vmatpush1.msra.mxu0 0.0
  %1810 = vmatprep.subr.mxu0 0.0
  %1811 = vmatpush1.msra.mxu0 0.0
  %1812 = vmatprep.subr.mxu0 0.0
  %1813 = vmatpush1.msra.mxu0 0.0
  %1814 = vmatprep.subr.mxu0 0.0
  %1815 = vmatpush1.msra.mxu0 0.0
  %1816 = vmatprep.subr.mxu0 0.0
  %1817 = vmatpush1.msra.mxu0 0.0
  %1818 = vmatprep.subr.mxu0 0.0
  %1819 = vmatpush1.msra.mxu0 0.0
  %1820 = vmatprep.subr.mxu0 0.0
  %1821 = vmatpush1.msra.mxu0 0.0
  %1822 = vmatprep.subr.mxu0 0.0
  %1823 = vmatpush1.msra.mxu0 0.0
  %1824 = vmatprep.subr.mxu0 0.0
  %1825 = vmatpush1.msra.mxu0 0.0
  %1826 = vmatprep.subr.mxu0 0.0
  %1827 = vmatpush1.msra.mxu0 0.0
  %1828 = vmatprep.subr.mxu0 0.0
  %1829 = vmatpush1.msra.mxu0 0.0
  %1830 = vmatprep.subr.mxu0 0.0
  %1831 = vmatpush1.msra.mxu0 0.0
  %1832 = vmatprep.subr.mxu0 0.0
  %1833 = vmatpush1.msra.mxu0 0.0
  %1834 = vmatprep.subr.mxu0 0.0
  %1835 = vmatpush1.msra.mxu0 0.0
  %1836 = vmatprep.subr.mxu0 0.0
  %1837 = vmatpush1.msra.mxu0 0.0
  %1838 = vmatprep.subr.mxu0 0.0
  %1839 = vmatpush1.msra.mxu0 0.0
  %1840 = vmatprep.subr.mxu0 0.0
  %1841 = vmatpush1.msra.mxu0 0.0
  %1842 = vmatprep.subr.mxu0 0.0
  %1843 = vmatpush1.msra.mxu0 0.0
  %1844 = vmatprep.subr.mxu0 0.0
  %1845 = vmatpush1.msra.mxu0 0.0
  %1846 = vmatprep.subr.mxu0 0.0
  %1847 = vmatpush1.msra.mxu0 0.0
  %1848 = vmatprep.subr.mxu0 0.0
  %1849 = vmatpush1.msra.mxu0 0.0
  %1850 = vmatprep.subr.mxu0 0.0
  %1851 = vmatpush1.msra.mxu0 0.0
  %1852 = vmatprep.subr.mxu0 0.0
  %1853 = vmatpush1.msra.mxu0 0.0
  %1854 = vmatprep.subr.mxu0 0.0
  %1855 = vmatpush1.msra.mxu0 0.0
  %1856 = vmatprep.mubr.f32.mxu0 0.0
  %1857 = vmatmul.mubr.f32.gmra.mrb[0].mxu0 %v1720
  %v1858 = vpop.f32.mrb[0].mxu0
  %v1859 = vadd.f32 0.0, %v1858
  %v1860 = vpop.f32.mrb[0].mxu0
  %1861 = vdwg.mxu0
  %1862 = vmatprep.subr.mxu0 0.0
  %1863 = vmatpush1.msra.mxu0 %v40
  %1864 = vmatprep.subr.mxu0 0.0
  %1865 = vmatpush1.msra.mxu0 %v41
  %1866 = vmatprep.subr.mxu0 0.0
  %1867 = vmatpush1.msra.mxu0 %v42
  %1868 = vmatprep.subr.mxu0 0.0
  %1869 = vmatpush1.msra.mxu0 %v43
  %1870 = vmatprep.subr.mxu0 0.0
  %1871 = vmatpush1.msra.mxu0 0.0
  %1872 = vmatprep.subr.mxu0 0.0
  %1873 = vmatpush1.msra.mxu0 0.0
  %1874 = vmatprep.subr.mxu0 0.0
  %1875 = vmatpush1.msra.mxu0 0.0
  %1876 = vmatprep.subr.mxu0 0.0
  %1877 = vmatpush1.msra.mxu0 0.0
  %1878 = vmatprep.subr.mxu0 0.0
  %1879 = vmatpush1.msra.mxu0 0.0
  %1880 = vmatprep.subr.mxu0 0.0
  %1881 = vmatpush1.msra.mxu0 0.0
  %1882 = vmatprep.subr.mxu0 0.0
  %1883 = vmatpush1.msra.mxu0 0.0
  %1884 = vmatprep.subr.mxu0 0.0
  %1885 = vmatpush1.msra.mxu0 0.0
  %1886 = vmatprep.subr.mxu0 0.0
  %1887 = vmatpush1.msra.mxu0 0.0
  %1888 = vmatprep.subr.mxu0 0.0
  %1889 = vmatpush1.msra.mxu0 0.0
  %1890 = vmatprep.subr.mxu0 0.0
  %1891 = vmatpush1.msra.mxu0 0.0
  %1892 = vmatprep.subr.mxu0 0.0
  %1893 = vmatpush1.msra.mxu0 0.0
  %1894 = vmatprep.subr.mxu0 0.0
  %1895 = vmatpush1.msra.mxu0 0.0
  %1896 = vmatprep.subr.mxu0 0.0
  %1897 = vmatpush1.msra.mxu0 0.0
  %1898 = vmatprep.subr.mxu0 0.0
  %1899 = vmatpush1.msra.mxu0 0.0
  %1900 = vmatprep.subr.mxu0 0.0
  %1901 = vmatpush1.msra.mxu0 0.0
  %1902 = vmatprep.subr.mxu0 0.0
  %1903 = vmatpush1.msra.mxu0 0.0
  %1904 = vmatprep.subr.mxu0 0.0
  %1905 = vmatpush1.msra.mxu0 0.0
  %1906 = vmatprep.subr.mxu0 0.0
  %1907 = vmatpush1.msra.mxu0 0.0
  %1908 = vmatprep.subr.mxu0 0.0
  %1909 = vmatpush1.msra.mxu0 0.0
  %1910 = vmatprep.subr.mxu0 0.0
  %1911 = vmatpush1.msra.mxu0 0.0
  %1912 = vmatprep.subr.mxu0 0.0
  %1913 = vmatpush1.msra.mxu0 0.0
  %1914 = vmatprep.subr.mxu0 0.0
  %1915 = vmatpush1.msra.mxu0 0.0
  %1916 = vmatprep.subr.mxu0 0.0
  %1917 = vmatpush1.msra.mxu0 0.0
  %1918 = vmatprep.subr.mxu0 0.0
  %1919 = vmatpush1.msra.mxu0 0.0
  %1920 = vmatprep.subr.mxu0 0.0
  %1921 = vmatpush1.msra.mxu0 0.0
  %1922 = vmatprep.subr.mxu0 0.0
  %1923 = vmatpush1.msra.mxu0 0.0
  %1924 = vmatprep.subr.mxu0 0.0
  %1925 = vmatpush1.msra.mxu0 0.0
  %1926 = vmatprep.mubr.f32.mxu0 0.0
  %1927 = vmatmul.mubr.f32.gmra.mrb[0].mxu0 %v1720
  %v1928 = vpop.f32.mrb[0].mxu0
  %v1929 = vadd.f32 %v193, %v1928
  %v1930 = vpop.f32.mrb[0].mxu0
  %1931 = vdwg.mxu0
  %v1932 = vld [vmem:[%s0 + $0xe] sm:$0x3]
  %v1933 = vadd.f32 %v1932, %v1789
  %v1934 = vxor.u32 %v1933, 2147483648
  %v1935 = vmul.f32 %v1934, 1.442695
  %v1936 = vpow.pop %v1935
  %v1937 = vadd.f32 %v1936, 1.0
  %v1938 = vrcp.pop %v1937
  %v1939 = vmul.f32 1.0, %v1938
  %v1940 = vld [vmem:[%s1 + $0xe] sm:$0x3]
  %v1941 = vadd.f32 %v1940, %v1859
  %v1942 = vxor.u32 %v1941, 2147483648
  %v1943 = vmul.f32 %v1942, 1.442695
  %v1944 = vpow.pop %v1943
  %v1945 = vadd.f32 %v1944, 1.0
  %v1946 = vrcp.pop %v1945
  %v1947 = vmul.f32 1.0, %v1946
  %v1948 = vld [vmem:[%s2 + $0xe] sm:$0x3]
  %v1949 = vmul.f32 %v1939, %v1929
  %v1950 = vadd.f32 %v1948, %v1949
  %v1951 = vtanh.pop %v1950
  %v1952 = vsub.f32 1.0, %v1947
  %v1953 = vmul.f32 %v1952, %v1951
  %v1954 = vmul.f32 %v1947, %v1717
  %v1955 = vadd.f32 %v1953, %v1954
  %1956 = vst.msk [vmem:[#allocation2 + $0xe] sm:$0x3] %vm289, %v1955
  %v1957 = vld [vmem:[#allocation2] sm:$0xff]
  %v1958 = vld [vmem:[#allocation2 + $0x8] sm:$0xff]
  %v1959 = vld [vmem:[%s7] sm:$0xff]
  %v1960 = vld [vmem:[%s7 + $0x8] sm:$0xff]
  %v1961 = vld [vmem:[%s7 + $0x10] sm:$0xff]
  %v1962 = vld [vmem:[%s7 + $0x18] sm:$0xff]
  %v1963 = vld [vmem:[%s8] sm:$0x1]
  %v1965 = vlaneseq
  %v1966 = vshrl.u32 %v1965, 7
  %v1967 = vsub.s32 0, %v1966
  %v1968 = vrot.slane %v1963, %v1967
  %v1971 = vsel %vm45, %v1957, 0
  %v1974 = vsel %vm45, %v1958, 0
  %1976 = vmatprep.subr.mxu0 0.0
  %1977 = vmatpush1.msra.mxu0 %v1959
  %1978 = vmatprep.subr.mxu0 0.0
  %1979 = vmatpush1.msra.mxu0 %v1960
  %1980 = vmatprep.subr.mxu0 0.0
  %1981 = vmatpush1.msra.mxu0 %v1961
  %1982 = vmatprep.subr.mxu0 0.0
  %1983 = vmatpush1.msra.mxu0 %v1962
  %1984 = vmatprep.subr.mxu0 0.0
  %1985 = vmatpush1.msra.mxu0 0.0
  %1986 = vmatprep.subr.mxu0 0.0
  %1987 = vmatpush1.msra.mxu0 0.0
  %1988 = vmatprep.subr.mxu0 0.0
  %1989 = vmatpush1.msra.mxu0 0.0
  %1990 = vmatprep.subr.mxu0 0.0
  %1991 = vmatpush1.msra.mxu0 0.0
  %1992 = vmatprep.subr.mxu0 0.0
  %1993 = vmatpush1.msra.mxu0 0.0
  %1994 = vmatprep.subr.mxu0 0.0
  %1995 = vmatpush1.msra.mxu0 0.0
  %1996 = vmatprep.subr.mxu0 0.0
  %1997 = vmatpush1.msra.mxu0 0.0
  %1998 = vmatprep.subr.mxu0 0.0
  %1999 = vmatpush1.msra.mxu0 0.0
  %2000 = vmatprep.subr.mxu0 0.0
  %2001 = vmatpush1.msra.mxu0 0.0
  %2002 = vmatprep.subr.mxu0 0.0
  %2003 = vmatpush1.msra.mxu0 0.0
  %2004 = vmatprep.subr.mxu0 0.0
  %2005 = vmatpush1.msra.mxu0 0.0
  %2006 = vmatprep.subr.mxu0 0.0
  %2007 = vmatpush1.msra.mxu0 0.0
  %2008 = vmatprep.subr.mxu0 0.0
  %2009 = vmatpush1.msra.mxu0 0.0
  %2010 = vmatprep.subr.mxu0 0.0
  %2011 = vmatpush1.msra.mxu0 0.0
  %2012 = vmatprep.subr.mxu0 0.0
  %2013 = vmatpush1.msra.mxu0 0.0
  %2014 = vmatprep.subr.mxu0 0.0
  %2015 = vmatpush1.msra.mxu0 0.0
  %2016 = vmatprep.subr.mxu0 0.0
  %2017 = vmatpush1.msra.mxu0 0.0
  %2018 = vmatprep.subr.mxu0 0.0
  %2019 = vmatpush1.msra.mxu0 0.0
  %2020 = vmatprep.subr.mxu0 0.0
  %2021 = vmatpush1.msra.mxu0 0.0
  %2022 = vmatprep.subr.mxu0 0.0
  %2023 = vmatpush1.msra.mxu0 0.0
  %2024 = vmatprep.subr.mxu0 0.0
  %2025 = vmatpush1.msra.mxu0 0.0
  %2026 = vmatprep.subr.mxu0 0.0
  %2027 = vmatpush1.msra.mxu0 0.0
  %2028 = vmatprep.subr.mxu0 0.0
  %2029 = vmatpush1.msra.mxu0 0.0
  %2030 = vmatprep.subr.mxu0 0.0
  %2031 = vmatpush1.msra.mxu0 0.0
  %2032 = vmatprep.subr.mxu0 0.0
  %2033 = vmatpush1.msra.mxu0 0.0
  %2034 = vmatprep.subr.mxu0 0.0
  %2035 = vmatpush1.msra.mxu0 0.0
  %2036 = vmatprep.subr.mxu0 0.0
  %2037 = vmatpush1.msra.mxu0 0.0
  %2038 = vmatprep.subr.mxu0 0.0
  %2039 = vmatpush1.msra.mxu0 0.0
  %2040 = vmatprep.mubr.f32.mxu0 0.0
  %2041 = vmatmul.mubr.f32.gmra.mrb[0].mxu0 %v1971
  %v2042 = vpop.f32.mrb[0].mxu0
  %v2043 = vadd.f32 %v1968, %v2042
  %v2044 = vpop.f32.mrb[0].mxu0
  %2045 = vmatprep.mubr.f32.mxu0 0.0
  %2046 = vmatmul.mubr.f32.gmra.mrb[0].mxu0 %v1974
  %v2047 = vpop.f32.mrb[0].mxu0
  %v2048 = vadd.f32 %v1968, %v2047
  %v2049 = vpop.f32.mrb[0].mxu0
  %2050 = vdwg.mxu0
  %vm2051 = vcmask 80896
  %2052 = vst.msk [vmem:[%s9] sm:$0xff] %vm2051, %v2043
  %2053 = vst.msk [vmem:[%s9 + $0x8] sm:$0xff] %vm2051, %v2048
  // Predicated region
  $region38: #{gru_model_forward.1} parent=0 // pred_check
    _
  $region39: #{gru_model_forward.1} parent=0 // pred_check_branch
    %2055 = sbr.rel (0) target = $region41
  $region40: #{gru_model_forward.1} parent=0 // pred_region
    _
  $region41: #{gru_model_forward.1} parent=0 // pred_fallthru
    _
  // Predicated region
  $region42: #{gru_model_forward.1} parent=0 // pred_check
    _
  $region43: #{gru_model_forward.1} parent=0 // pred_check_branch
    %2057 = sbr.rel (0) target = $region45
  $region44: #{gru_model_forward.1} parent=0 // pred_region
    _
  $region45: #{gru_model_forward.1} parent=0 // pred_fallthru
    _

</llo_original>
